<compile_context>
chip_gen: v5e
topology: v5e:2x2
jax: 0.10.0
libtpu: 0.0.40
codegen_flags: <defaults>
</compile_context>

<pallas_src>
import functools

import jax
import jax.numpy as jnp
from jax.experimental import pallas as pl
from jax.experimental.pallas import tpu as pltpu

M_NODES = 156      # fixed by the module (LSTM input_size=156, fc out_features=156)
LSTM_HID = 32      # fixed by the module
T_RECENT = 4       # x[:, :4] = recent, x[:, 4:] = period


def _vmem():
    # whole-array-in-VMEM spec; all operands are tiny (<= 156x156 f32)
    return pl.BlockSpec(memory_space=pltpu.MemorySpace.VMEM)


# ---------------------------------------------------------------------------
# In-kernel helpers (traced inside the single fused kernel body).
# ---------------------------------------------------------------------------
def _gat_attention_T(alpha, emb, embT, adjT, wa1_col, wa2_row):
    """Build att^T (M, M), where att is the torch attention matrix.

    f1[i] = h[i]·a1 = emb[i,:]·(W@a1), computed as a VPU multiply + reduction
    (no degenerate MXU matmul).  att^T[j,i] = softmax_j( mask(leaky(f1[i]+f2[j])) ).
    """
    f1_row = jnp.sum(embT * wa1_col, axis=0, keepdims=True)        # (1, M)   f1[i]
    f2_col = jnp.sum(emb * wa2_row, axis=1, keepdims=True)         # (M, 1)   f2[j]
    eT = f2_col + f1_row                                           # eT[j,i] = e[i,j]
    eT = jnp.where(eT > 0, eT, jnp.float32(alpha) * eT)            # LeakyReLU(alpha)
    eT = jnp.where(adjT > 0, eT, jnp.float32(-9e15))               # masked attention
    eT = eT - jnp.max(eT, axis=0, keepdims=True)                   # softmax over torch dim=1
    p = jnp.exp(eT)
    inv = pl.reciprocal(jnp.sum(p, axis=0, keepdims=True), approx=True)
    return p * inv                                                 # (M, M) = att^T


def _lstm_last(n, t_steps, hid, seq_tm, w_ih, w_hh, b):
    """seq_tm: (t_steps*n, M), time-major rows [t*n + b].  Returns final hidden (n, hid)."""
    # Hoisted input projection: one matmul for all timesteps.
    gx = jnp.dot(seq_tm, w_ih, preferred_element_type=jnp.float32) + b     # (T*N, 4H)
    h = jnp.zeros((n, hid), jnp.float32)
    c = jnp.zeros((n, hid), jnp.float32)
    for t in range(t_steps):                       # static unroll (t_steps == 4)
        gates = gx[t * n:(t + 1) * n, :] + jnp.dot(
            h, w_hh, preferred_element_type=jnp.float32)                   # (N, 4H)
        sg = jax.nn.sigmoid(gates)                 # full lane-width once, slice after
        tg = jnp.tanh(gates)
        i_g = sg[:, 0 * hid:1 * hid]
        f_g = sg[:, 1 * hid:2 * hid]
        g_g = tg[:, 2 * hid:3 * hid]
        o_g = sg[:, 3 * hid:4 * hid]
        c = f_g * c + i_g * g_g
        h = o_g * jnp.tanh(c)
    return h


# ---------------------------------------------------------------------------
# The single fused kernel: 2x GAT filter + 2x LSTM + final Linear.
# ---------------------------------------------------------------------------
def gat_lstm_kernel(alpha, n, t_r, t_p, hid,
                    emb_ref, embT_ref, adjT_ref, xr_ref, xp_ref,
                    wa1r_ref, wa2r_ref, wa1p_ref, wa2p_ref,
                    wihr_ref, whhr_ref, br_ref,
                    wihp_ref, whhp_ref, bp_ref,
                    fcw_ref, fcb_ref, o_ref):
    emb = emb_ref[...]            # (M, nfeat)
    embT = embT_ref[...]          # (nfeat, M)
    adjT = adjT_ref[...]          # (M, M)

    attT_r = _gat_attention_T(alpha, emb, embT, adjT, wa1r_ref[...], wa2r_ref[...])
    attT_p = _gat_attention_T(alpha, emb, embT, adjT, wa1p_ref[...], wa2p_ref[...])

    # Apply attention to all timesteps at once: out = x @ att^T (no RHS transpose in the dot).
    gr = jnp.dot(xr_ref[...], attT_r, preferred_element_type=jnp.float32)   # (t_r*n, M)
    gp = jnp.dot(xp_ref[...], attT_p, preferred_element_type=jnp.float32)   # (t_p*n, M)

    h_r = _lstm_last(n, t_r, hid, gr, wihr_ref[...], whhr_ref[...], br_ref[...])   # (n, H)
    h_p = _lstm_last(n, t_p, hid, gp, wihp_ref[...], whhp_ref[...], bp_ref[...])   # (n, H)

    # Final fc on the concatenated hidden state, done as two matmuls (no concat op).
    fcw = fcw_ref[...]                                            # (2H, M)
    o_ref[...] = (jnp.dot(h_r, fcw[:hid, :], preferred_element_type=jnp.float32)
                  + jnp.dot(h_p, fcw[hid:, :], preferred_element_type=jnp.float32)
                  + fcb_ref[...])


# ---------------------------------------------------------------------------
# Forward wrapper: only layout plumbing + tiny (W@a) folds outside the kernel.
# ---------------------------------------------------------------------------
def gat_lstm_forward(params, embedding, x, adj, alpha):
    N, T, M = x.shape
    t_r = T_RECENT
    t_p = T - T_RECENT
    nhid = params["W_recent"].shape[1]

    # Layout plumbing (tiny XLA ops); kernel inputs become time-major, lane-dense 2-D slabs.
    xr = jnp.transpose(x[:, :t_r, :], (1, 0, 2)).reshape(t_r * N, M)
    xp = jnp.transpose(x[:, t_r:, :], (1, 0, 2)).reshape(t_p * N, M)
    embT = jnp.transpose(embedding)          # (nfeat, M)
    adjT = jnp.transpose(adj)                # (M, M), mask for the transposed attention

    # Fold h@a1 / h@a2 into emb @ (W @ a1/2): precompute the tiny (nfeat,) vectors here.
    def wa_fold(W, a):
        wa1 = W @ a[:nhid]                        # (nfeat, 1) -> column vs embT
        wa2 = jnp.transpose(W @ a[nhid:])         # (1, nfeat) -> row vs emb
        return wa1, wa2

    wa1_r, wa2_r = wa_fold(params["W_recent"], params["a_recent"])
    wa1_p, wa2_p = wa_fold(params["W_period"], params["a_period"])

    kernel = functools.partial(gat_lstm_kernel, float(alpha), N, t_r, t_p, LSTM_HID)
    return pl.pallas_call(
        kernel,
        out_shape=jax.ShapeDtypeStruct((N, M), jnp.float32),
        in_specs=[_vmem()] * 17,
        out_specs=_vmem(),
    )(embedding, embT, adjT, xr, xp,
      wa1_r, wa2_r, wa1_p, wa2_p,
      params["lstm_r_w_ih_t"], params["lstm_r_w_hh_t"], params["lstm_r_b"],
      params["lstm_p_w_ih_t"], params["lstm_p_w_hh_t"], params["lstm_p_b"],
      params["fc_w_t"], params["fc_b_row"])


# ---------------------------------------------------------------------------
# Pure-JAX reference (mirrors the PyTorch forward) for correctness checking.
# ---------------------------------------------------------------------------
def reference_forward(params, embedding, x, adj, alpha):
    def gat(W, a, xs):                                  # xs: (N, T, M)
        h = embedding @ W
        nhid = W.shape[1]
        f1 = h @ a[:nhid]                               # (M, 1)
        f2 = h @ a[nhid:]                               # (M, 1)
        e = f1 + jnp.transpose(f2)                      # e[i,j] = f1[i] + f2[j]
        e = jnp.where(e > 0, e, alpha * e)
        e = jnp.where(adj > 0, e, -9e15)
        att = jax.nn.softmax(e, axis=1)
        return jnp.einsum("ntj,ij->nti", xs, att)

    def lstm(xs, w_ih_t, w_hh_t, b):                    # xs: (N, T, M)
        Nb, Tt, _ = xs.shape
        H = w_hh_t.shape[0]
        h = jnp.zeros((Nb, H), jnp.float32)
        c = jnp.zeros((Nb, H), jnp.float32)
        for t in range(Tt):
            g = xs[:, t, :] @ w_ih_t + h @ w_hh_t + b
            i = jax.nn.sigmoid(g[:, :H])
            f = jax.nn.sigmoid(g[:, H:2 * H])
            gg = jnp.tanh(g[:, 2 * H:3 * H])
            o = jax.nn.sigmoid(g[:, 3 * H:])
            c = f * c + i * gg
            h = o * jnp.tanh(c)
        return h

    xr = gat(params["W_recent"], params["a_recent"], x[:, :T_RECENT, :])
    xp = gat(params["W_period"], params["a_period"], x[:, T_RECENT:, :])
    hr = lstm(xr, params["lstm_r_w_ih_t"], params["lstm_r_w_hh_t"], params["lstm_r_b"])
    hp = lstm(xp, params["lstm_p_w_ih_t"], params["lstm_p_w_hh_t"], params["lstm_p_b"])
    cat = jnp.concatenate([hr, hp], axis=1)
    return cat @ params["fc_w_t"] + params["fc_b_row"]


# ---------------------------------------------------------------------------
# Deterministic parameter initialization (torch shapes; LSTM/FC stored pre-transposed).
# ---------------------------------------------------------------------------
def init_params(key, nfeat, nhid):
    ks = jax.random.split(key, 16)

    def xavier(k, shape, gain=1.414):
        bound = gain * (6.0 / (shape[0] + shape[1])) ** 0.5
        return jax.random.uniform(k, shape, jnp.float32, -bound, bound)

    def uni(k, shape, bound):
        return jax.random.uniform(k, shape, jnp.float32, -bound, bound)

    H, M = LSTM_HID, M_NODES
    kl = 1.0 / (H ** 0.5)
    kf = 1.0 / ((2 * H) ** 0.5)

    lstm_r_w_ih = uni(ks[4], (4 * H, M), kl)       # torch layout (4H, in)
    lstm_r_w_hh = uni(ks[5], (4 * H, H), kl)
    lstm_p_w_ih = uni(ks[8], (4 * H, M), kl)
    lstm_p_w_hh = uni(ks[9], (4 * H, H), kl)
    fc_w = uni(ks[12], (M, 2 * H), kf)             # torch layout (out, in)

    return {
        "W_recent": xavier(ks[0], (nfeat, nhid)),
        "a_recent": xavier(ks[1], (2 * nhid, 1)),
        "W_period": xavier(ks[2], (nfeat, nhid)),
        "a_period": xavier(ks[3], (2 * nhid, 1)),
        # pre-transposed at setup (no per-forward glue ops)
        "lstm_r_w_ih_t": jnp.transpose(lstm_r_w_ih),                               # (M, 4H)
        "lstm_r_w_hh_t": jnp.transpose(lstm_r_w_hh),                               # (H, 4H)
        "lstm_r_b": (uni(ks[6], (4 * H,), kl) + uni(ks[7], (4 * H,), kl)).reshape(1, 4 * H),
        "lstm_p_w_ih_t": jnp.transpose(lstm_p_w_ih),
        "lstm_p_w_hh_t": jnp.transpose(lstm_p_w_hh),
        "lstm_p_b": (uni(ks[10], (4 * H,), kl) + uni(ks[11], (4 * H,), kl)).reshape(1, 4 * H),
        "fc_w_t": jnp.transpose(fc_w),                                             # (2H, M)
        "fc_b_row": uni(ks[13], (M,), kf).reshape(1, M),
    }


if __name__ == "__main__":
    nfeat, nhid, alpha = 16, 8, 0.2
    N_batch, T = 4, 8                      # T = 4 recent + 4 period steps
    M = M_NODES

    key = jax.random.PRNGKey(0)
    k_emb, k_x, k_adj, k_par = jax.random.split(key, 4)

    embedding = jax.random.normal(k_emb, (M, nfeat), jnp.float32)
    x = jax.random.normal(k_x, (N_batch, T, M), jnp.float32)
    adj = (jax.random.uniform(k_adj, (M, M)) > 0.5).astype(jnp.float32)
    adj = adj + jnp.eye(M, dtype=jnp.float32)          # ensure self-loops
    params = init_params(k_par, nfeat, nhid)

    fwd = jax.jit(functools.partial(gat_lstm_forward, alpha=alpha))
    out = jax.block_until_ready(fwd(params, embedding, x, adj))
    ref = jax.block_until_ready(reference_forward(params, embedding, x, adj, alpha))

    assert out.shape == (N_batch, M_NODES), out.shape
    assert bool(jnp.all(jnp.isfinite(out)))
    assert bool(jnp.allclose(out, ref, rtol=5e-2, atol=5e-2)), \
        float(jnp.max(jnp.abs(out - ref)))
    print("KERNEL_OK")
</pallas_src>

<mosaic_0001>
module attributes {stable_mosaic.version = 11 : i64} {
  func.func @gat_lstm_kernel(%arg0: memref<156x16xf32, #tpu.memory_space<vmem>>, %arg1: memref<16x156xf32, #tpu.memory_space<vmem>>, %arg2: memref<156x156xf32, #tpu.memory_space<vmem>>, %arg3: memref<16x156xf32, #tpu.memory_space<vmem>>, %arg4: memref<16x156xf32, #tpu.memory_space<vmem>>, %arg5: memref<16x1xf32, #tpu.memory_space<vmem>>, %arg6: memref<1x16xf32, #tpu.memory_space<vmem>>, %arg7: memref<16x1xf32, #tpu.memory_space<vmem>>, %arg8: memref<1x16xf32, #tpu.memory_space<vmem>>, %arg9: memref<156x128xf32, #tpu.memory_space<vmem>>, %arg10: memref<32x128xf32, #tpu.memory_space<vmem>>, %arg11: memref<1x128xf32, #tpu.memory_space<vmem>>, %arg12: memref<156x128xf32, #tpu.memory_space<vmem>>, %arg13: memref<32x128xf32, #tpu.memory_space<vmem>>, %arg14: memref<1x128xf32, #tpu.memory_space<vmem>>, %arg15: memref<64x156xf32, #tpu.memory_space<vmem>>, %arg16: memref<1x156xf32, #tpu.memory_space<vmem>>, %arg17: memref<4x156xf32, #tpu.memory_space<vmem>>) attributes {dimension_semantics = [], scalar_prefetch = 0 : i64, scratch_operands = 0 : i64, tpu.core_type = #tpu.core_type<tc>} {
    %c0 = arith.constant 0 : index
    %c0_0 = arith.constant 0 : index
    %0 = vector.load %arg0[%c0, %c0_0] : memref<156x16xf32, #tpu.memory_space<vmem>>, vector<156x16xf32>
    %c0_1 = arith.constant 0 : index
    %c0_2 = arith.constant 0 : index
    %1 = vector.load %arg1[%c0_1, %c0_2] : memref<16x156xf32, #tpu.memory_space<vmem>>, vector<16x156xf32>
    %c0_3 = arith.constant 0 : index
    %c0_4 = arith.constant 0 : index
    %2 = vector.load %arg2[%c0_3, %c0_4] : memref<156x156xf32, #tpu.memory_space<vmem>>, vector<156x156xf32>
    %c0_5 = arith.constant 0 : index
    %c0_6 = arith.constant 0 : index
    %3 = vector.load %arg5[%c0_5, %c0_6] : memref<16x1xf32, #tpu.memory_space<vmem>>, vector<16x1xf32>
    %c0_7 = arith.constant 0 : index
    %c0_8 = arith.constant 0 : index
    %4 = vector.load %arg6[%c0_7, %c0_8] : memref<1x16xf32, #tpu.memory_space<vmem>>, vector<1x16xf32>
    %5 = vector.broadcast %3 : vector<16x1xf32> to vector<16x156xf32>
    %6 = arith.mulf %1, %5 : vector<16x156xf32>
    %cst = arith.constant dense<0.000000e+00> : vector<156xf32>
    %7 = vector.multi_reduction <add>, %6, %cst [0] : vector<16x156xf32> to vector<156xf32>
    %8 = vector.shape_cast %7 : vector<156xf32> to vector<1x156xf32>
    %9 = vector.broadcast %4 : vector<1x16xf32> to vector<156x16xf32>
    %10 = arith.mulf %0, %9 : vector<156x16xf32>
    %cst_9 = arith.constant dense<0.000000e+00> : vector<156xf32>
    %11 = vector.multi_reduction <add>, %10, %cst_9 [1] : vector<156x16xf32> to vector<156xf32>
    %12 = vector.shape_cast %11 : vector<156xf32> to vector<156x1xf32>
    %13 = vector.broadcast %12 : vector<156x1xf32> to vector<156x156xf32>
    %14 = vector.broadcast %8 : vector<1x156xf32> to vector<156x156xf32>
    %15 = arith.addf %13, %14 : vector<156x156xf32>
    %cst_10 = arith.constant 0.000000e+00 : f32
    %16 = vector.broadcast %cst_10 : f32 to vector<156x156xf32>
    %17 = arith.cmpf ogt, %15, %16 : vector<156x156xf32>
    %cst_11 = arith.constant 2.000000e-01 : f32
    %18 = vector.broadcast %cst_11 : f32 to vector<156x156xf32>
    %19 = arith.mulf %18, %15 : vector<156x156xf32>
    %20 = arith.select %17, %15, %19 : vector<156x156xi1>, vector<156x156xf32>
    %cst_12 = arith.constant 0.000000e+00 : f32
    %21 = vector.broadcast %cst_12 : f32 to vector<156x156xf32>
    %22 = arith.cmpf ogt, %2, %21 : vector<156x156xf32>
    %cst_13 = arith.constant -9.000000e+15 : f32
    %23 = vector.broadcast %cst_13 : f32 to vector<156x156xf32>
    %24 = arith.select %22, %20, %23 : vector<156x156xi1>, vector<156x156xf32>
    %cst_14 = arith.constant dense<0xFF800000> : vector<156xf32>
    %25 = vector.multi_reduction <maximumf>, %24, %cst_14 [0] : vector<156x156xf32> to vector<156xf32>
    %26 = vector.shape_cast %25 : vector<156xf32> to vector<1x156xf32>
    %27 = vector.broadcast %26 : vector<1x156xf32> to vector<156x156xf32>
    %28 = arith.subf %24, %27 : vector<156x156xf32>
    %29 = math.exp %28 : vector<156x156xf32>
    %cst_15 = arith.constant dense<0.000000e+00> : vector<156xf32>
    %30 = vector.multi_reduction <add>, %29, %cst_15 [0] : vector<156x156xf32> to vector<156xf32>
    %31 = vector.shape_cast %30 : vector<156xf32> to vector<1x156xf32>
    %32 = tpu.reciprocal %31 {approx = true} : vector<1x156xf32> -> vector<1x156xf32>
    %33 = vector.broadcast %32 : vector<1x156xf32> to vector<156x156xf32>
    %34 = arith.mulf %29, %33 : vector<156x156xf32>
    %c0_16 = arith.constant 0 : index
    %c0_17 = arith.constant 0 : index
    %35 = vector.load %arg7[%c0_16, %c0_17] : memref<16x1xf32, #tpu.memory_space<vmem>>, vector<16x1xf32>
    %c0_18 = arith.constant 0 : index
    %c0_19 = arith.constant 0 : index
    %36 = vector.load %arg8[%c0_18, %c0_19] : memref<1x16xf32, #tpu.memory_space<vmem>>, vector<1x16xf32>
    %37 = vector.broadcast %35 : vector<16x1xf32> to vector<16x156xf32>
    %38 = arith.mulf %1, %37 : vector<16x156xf32>
    %cst_20 = arith.constant dense<0.000000e+00> : vector<156xf32>
    %39 = vector.multi_reduction <add>, %38, %cst_20 [0] : vector<16x156xf32> to vector<156xf32>
    %40 = vector.shape_cast %39 : vector<156xf32> to vector<1x156xf32>
    %41 = vector.broadcast %36 : vector<1x16xf32> to vector<156x16xf32>
    %42 = arith.mulf %0, %41 : vector<156x16xf32>
    %cst_21 = arith.constant dense<0.000000e+00> : vector<156xf32>
    %43 = vector.multi_reduction <add>, %42, %cst_21 [1] : vector<156x16xf32> to vector<156xf32>
    %44 = vector.shape_cast %43 : vector<156xf32> to vector<156x1xf32>
    %45 = vector.broadcast %44 : vector<156x1xf32> to vector<156x156xf32>
    %46 = vector.broadcast %40 : vector<1x156xf32> to vector<156x156xf32>
    %47 = arith.addf %45, %46 : vector<156x156xf32>
    %cst_22 = arith.constant 0.000000e+00 : f32
    %48 = vector.broadcast %cst_22 : f32 to vector<156x156xf32>
    %49 = arith.cmpf ogt, %47, %48 : vector<156x156xf32>
    %cst_23 = arith.constant 2.000000e-01 : f32
    %50 = vector.broadcast %cst_23 : f32 to vector<156x156xf32>
    %51 = arith.mulf %50, %47 : vector<156x156xf32>
    %52 = arith.select %49, %47, %51 : vector<156x156xi1>, vector<156x156xf32>
    %cst_24 = arith.constant 0.000000e+00 : f32
    %53 = vector.broadcast %cst_24 : f32 to vector<156x156xf32>
    %54 = arith.cmpf ogt, %2, %53 : vector<156x156xf32>
    %cst_25 = arith.constant -9.000000e+15 : f32
    %55 = vector.broadcast %cst_25 : f32 to vector<156x156xf32>
    %56 = arith.select %54, %52, %55 : vector<156x156xi1>, vector<156x156xf32>
    %cst_26 = arith.constant dense<0xFF800000> : vector<156xf32>
    %57 = vector.multi_reduction <maximumf>, %56, %cst_26 [0] : vector<156x156xf32> to vector<156xf32>
    %58 = vector.shape_cast %57 : vector<156xf32> to vector<1x156xf32>
    %59 = vector.broadcast %58 : vector<1x156xf32> to vector<156x156xf32>
    %60 = arith.subf %56, %59 : vector<156x156xf32>
    %61 = math.exp %60 : vector<156x156xf32>
    %cst_27 = arith.constant dense<0.000000e+00> : vector<156xf32>
    %62 = vector.multi_reduction <add>, %61, %cst_27 [0] : vector<156x156xf32> to vector<156xf32>
    %63 = vector.shape_cast %62 : vector<156xf32> to vector<1x156xf32>
    %64 = tpu.reciprocal %63 {approx = true} : vector<1x156xf32> -> vector<1x156xf32>
    %65 = vector.broadcast %64 : vector<1x156xf32> to vector<156x156xf32>
    %66 = arith.mulf %61, %65 : vector<156x156xf32>
    %c0_28 = arith.constant 0 : index
    %c0_29 = arith.constant 0 : index
    %67 = vector.load %arg3[%c0_28, %c0_29] : memref<16x156xf32, #tpu.memory_space<vmem>>, vector<16x156xf32>
    %cst_30 = arith.constant dense<0.000000e+00> : vector<16x156xf32>
    %68 = tpu.matmul %67, %34, %cst_30 {dimension_numbers = #tpu.dot_dimension_numbers<[1], [0], [0], [1], [0, 0, 1, 1], [], []>} : vector<16x156xf32>, vector<156x156xf32>, vector<16x156xf32> -> vector<16x156xf32>
    %c0_31 = arith.constant 0 : index
    %c0_32 = arith.constant 0 : index
    %69 = vector.load %arg4[%c0_31, %c0_32] : memref<16x156xf32, #tpu.memory_space<vmem>>, vector<16x156xf32>
    %cst_33 = arith.constant dense<0.000000e+00> : vector<16x156xf32>
    %70 = tpu.matmul %69, %66, %cst_33 {dimension_numbers = #tpu.dot_dimension_numbers<[1], [0], [0], [1], [0, 0, 1, 1], [], []>} : vector<16x156xf32>, vector<156x156xf32>, vector<16x156xf32> -> vector<16x156xf32>
    %c0_34 = arith.constant 0 : index
    %c0_35 = arith.constant 0 : index
    %71 = vector.load %arg9[%c0_34, %c0_35] : memref<156x128xf32, #tpu.memory_space<vmem>>, vector<156x128xf32>
    %c0_36 = arith.constant 0 : index
    %c0_37 = arith.constant 0 : index
    %72 = vector.load %arg10[%c0_36, %c0_37] : memref<32x128xf32, #tpu.memory_space<vmem>>, vector<32x128xf32>
    %c0_38 = arith.constant 0 : index
    %c0_39 = arith.constant 0 : index
    %73 = vector.load %arg11[%c0_38, %c0_39] : memref<1x128xf32, #tpu.memory_space<vmem>>, vector<1x128xf32>
    %cst_40 = arith.constant dense<0.000000e+00> : vector<16x128xf32>
    %74 = tpu.matmul %68, %71, %cst_40 {dimension_numbers = #tpu.dot_dimension_numbers<[1], [0], [0], [1], [0, 0, 1, 1], [], []>} : vector<16x156xf32>, vector<156x128xf32>, vector<16x128xf32> -> vector<16x128xf32>
    %75 = vector.broadcast %73 : vector<1x128xf32> to vector<16x128xf32>
    %76 = arith.addf %74, %75 : vector<16x128xf32>
    %cst_41 = arith.constant 0.000000e+00 : f32
    %77 = vector.broadcast %cst_41 : f32 to vector<4x32xf32>
    %cst_42 = arith.constant 0.000000e+00 : f32
    %78 = vector.broadcast %cst_42 : f32 to vector<4x32xf32>
    %79 = vector.extract_strided_slice %76 {offsets = [0, 0], sizes = [4, 128], strides = [1, 1]} : vector<16x128xf32> to vector<4x128xf32>
    %cst_43 = arith.constant dense<0.000000e+00> : vector<4x128xf32>
    %80 = tpu.matmul %77, %72, %cst_43 {dimension_numbers = #tpu.dot_dimension_numbers<[1], [0], [0], [1], [0, 0, 1, 1], [], []>} : vector<4x32xf32>, vector<32x128xf32>, vector<4x128xf32> -> vector<4x128xf32>
    %81 = arith.addf %79, %80 : vector<4x128xf32>
    %82 = arith.negf %81 : vector<4x128xf32>
    %83 = math.exp %82 : vector<4x128xf32>
    %cst_44 = arith.constant 1.000000e+00 : f32
    %84 = vector.broadcast %cst_44 : f32 to vector<4x128xf32>
    %85 = arith.addf %84, %83 : vector<4x128xf32>
    %86 = arith.divf %84, %85 : vector<4x128xf32>
    %87 = math.tanh %81 : vector<4x128xf32>
    %88 = vector.extract_strided_slice %86 {offsets = [0, 0], sizes = [4, 32], strides = [1, 1]} : vector<4x128xf32> to vector<4x32xf32>
    %89 = vector.extract_strided_slice %86 {offsets = [0, 32], sizes = [4, 32], strides = [1, 1]} : vector<4x128xf32> to vector<4x32xf32>
    %90 = vector.extract_strided_slice %87 {offsets = [0, 64], sizes = [4, 32], strides = [1, 1]} : vector<4x128xf32> to vector<4x32xf32>
    %91 = vector.extract_strided_slice %86 {offsets = [0, 96], sizes = [4, 32], strides = [1, 1]} : vector<4x128xf32> to vector<4x32xf32>
    %92 = arith.mulf %89, %78 : vector<4x32xf32>
    %93 = arith.mulf %88, %90 : vector<4x32xf32>
    %94 = arith.addf %92, %93 : vector<4x32xf32>
    %95 = math.tanh %94 : vector<4x32xf32>
    %96 = arith.mulf %91, %95 : vector<4x32xf32>
    %97 = vector.extract_strided_slice %76 {offsets = [4, 0], sizes = [4, 128], strides = [1, 1]} : vector<16x128xf32> to vector<4x128xf32>
    %cst_45 = arith.constant dense<0.000000e+00> : vector<4x128xf32>
    %98 = tpu.matmul %96, %72, %cst_45 {dimension_numbers = #tpu.dot_dimension_numbers<[1], [0], [0], [1], [0, 0, 1, 1], [], []>} : vector<4x32xf32>, vector<32x128xf32>, vector<4x128xf32> -> vector<4x128xf32>
    %99 = arith.addf %97, %98 : vector<4x128xf32>
    %100 = arith.negf %99 : vector<4x128xf32>
    %101 = math.exp %100 : vector<4x128xf32>
    %cst_46 = arith.constant 1.000000e+00 : f32
    %102 = vector.broadcast %cst_46 : f32 to vector<4x128xf32>
    %103 = arith.addf %102, %101 : vector<4x128xf32>
    %104 = arith.divf %102, %103 : vector<4x128xf32>
    %105 = math.tanh %99 : vector<4x128xf32>
    %106 = vector.extract_strided_slice %104 {offsets = [0, 0], sizes = [4, 32], strides = [1, 1]} : vector<4x128xf32> to vector<4x32xf32>
    %107 = vector.extract_strided_slice %104 {offsets = [0, 32], sizes = [4, 32], strides = [1, 1]} : vector<4x128xf32> to vector<4x32xf32>
    %108 = vector.extract_strided_slice %105 {offsets = [0, 64], sizes = [4, 32], strides = [1, 1]} : vector<4x128xf32> to vector<4x32xf32>
    %109 = vector.extract_strided_slice %104 {offsets = [0, 96], sizes = [4, 32], strides = [1, 1]} : vector<4x128xf32> to vector<4x32xf32>
    %110 = arith.mulf %107, %94 : vector<4x32xf32>
    %111 = arith.mulf %106, %108 : vector<4x32xf32>
    %112 = arith.addf %110, %111 : vector<4x32xf32>
    %113 = math.tanh %112 : vector<4x32xf32>
    %114 = arith.mulf %109, %113 : vector<4x32xf32>
    %115 = vector.extract_strided_slice %76 {offsets = [8, 0], sizes = [4, 128], strides = [1, 1]} : vector<16x128xf32> to vector<4x128xf32>
    %cst_47 = arith.constant dense<0.000000e+00> : vector<4x128xf32>
    %116 = tpu.matmul %114, %72, %cst_47 {dimension_numbers = #tpu.dot_dimension_numbers<[1], [0], [0], [1], [0, 0, 1, 1], [], []>} : vector<4x32xf32>, vector<32x128xf32>, vector<4x128xf32> -> vector<4x128xf32>
    %117 = arith.addf %115, %116 : vector<4x128xf32>
    %118 = arith.negf %117 : vector<4x128xf32>
    %119 = math.exp %118 : vector<4x128xf32>
    %cst_48 = arith.constant 1.000000e+00 : f32
    %120 = vector.broadcast %cst_48 : f32 to vector<4x128xf32>
    %121 = arith.addf %120, %119 : vector<4x128xf32>
    %122 = arith.divf %120, %121 : vector<4x128xf32>
    %123 = math.tanh %117 : vector<4x128xf32>
    %124 = vector.extract_strided_slice %122 {offsets = [0, 0], sizes = [4, 32], strides = [1, 1]} : vector<4x128xf32> to vector<4x32xf32>
    %125 = vector.extract_strided_slice %122 {offsets = [0, 32], sizes = [4, 32], strides = [1, 1]} : vector<4x128xf32> to vector<4x32xf32>
    %126 = vector.extract_strided_slice %123 {offsets = [0, 64], sizes = [4, 32], strides = [1, 1]} : vector<4x128xf32> to vector<4x32xf32>
    %127 = vector.extract_strided_slice %122 {offsets = [0, 96], sizes = [4, 32], strides = [1, 1]} : vector<4x128xf32> to vector<4x32xf32>
    %128 = arith.mulf %125, %112 : vector<4x32xf32>
    %129 = arith.mulf %124, %126 : vector<4x32xf32>
    %130 = arith.addf %128, %129 : vector<4x32xf32>
    %131 = math.tanh %130 : vector<4x32xf32>
    %132 = arith.mulf %127, %131 : vector<4x32xf32>
    %133 = vector.extract_strided_slice %76 {offsets = [12, 0], sizes = [4, 128], strides = [1, 1]} : vector<16x128xf32> to vector<4x128xf32>
    %cst_49 = arith.constant dense<0.000000e+00> : vector<4x128xf32>
    %134 = tpu.matmul %132, %72, %cst_49 {dimension_numbers = #tpu.dot_dimension_numbers<[1], [0], [0], [1], [0, 0, 1, 1], [], []>} : vector<4x32xf32>, vector<32x128xf32>, vector<4x128xf32> -> vector<4x128xf32>
    %135 = arith.addf %133, %134 : vector<4x128xf32>
    %136 = arith.negf %135 : vector<4x128xf32>
    %137 = math.exp %136 : vector<4x128xf32>
    %cst_50 = arith.constant 1.000000e+00 : f32
    %138 = vector.broadcast %cst_50 : f32 to vector<4x128xf32>
    %139 = arith.addf %138, %137 : vector<4x128xf32>
    %140 = arith.divf %138, %139 : vector<4x128xf32>
    %141 = math.tanh %135 : vector<4x128xf32>
    %142 = vector.extract_strided_slice %140 {offsets = [0, 0], sizes = [4, 32], strides = [1, 1]} : vector<4x128xf32> to vector<4x32xf32>
    %143 = vector.extract_strided_slice %140 {offsets = [0, 32], sizes = [4, 32], strides = [1, 1]} : vector<4x128xf32> to vector<4x32xf32>
    %144 = vector.extract_strided_slice %141 {offsets = [0, 64], sizes = [4, 32], strides = [1, 1]} : vector<4x128xf32> to vector<4x32xf32>
    %145 = vector.extract_strided_slice %140 {offsets = [0, 96], sizes = [4, 32], strides = [1, 1]} : vector<4x128xf32> to vector<4x32xf32>
    %146 = arith.mulf %143, %130 : vector<4x32xf32>
    %147 = arith.mulf %142, %144 : vector<4x32xf32>
    %148 = arith.addf %146, %147 : vector<4x32xf32>
    %149 = math.tanh %148 : vector<4x32xf32>
    %150 = arith.mulf %145, %149 : vector<4x32xf32>
    %c0_51 = arith.constant 0 : index
    %c0_52 = arith.constant 0 : index
    %151 = vector.load %arg12[%c0_51, %c0_52] : memref<156x128xf32, #tpu.memory_space<vmem>>, vector<156x128xf32>
    %c0_53 = arith.constant 0 : index
    %c0_54 = arith.constant 0 : index
    %152 = vector.load %arg13[%c0_53, %c0_54] : memref<32x128xf32, #tpu.memory_space<vmem>>, vector<32x128xf32>
    %c0_55 = arith.constant 0 : index
    %c0_56 = arith.constant 0 : index
    %153 = vector.load %arg14[%c0_55, %c0_56] : memref<1x128xf32, #tpu.memory_space<vmem>>, vector<1x128xf32>
    %cst_57 = arith.constant dense<0.000000e+00> : vector<16x128xf32>
    %154 = tpu.matmul %70, %151, %cst_57 {dimension_numbers = #tpu.dot_dimension_numbers<[1], [0], [0], [1], [0, 0, 1, 1], [], []>} : vector<16x156xf32>, vector<156x128xf32>, vector<16x128xf32> -> vector<16x128xf32>
    %155 = vector.broadcast %153 : vector<1x128xf32> to vector<16x128xf32>
    %156 = arith.addf %154, %155 : vector<16x128xf32>
    %cst_58 = arith.constant 0.000000e+00 : f32
    %157 = vector.broadcast %cst_58 : f32 to vector<4x32xf32>
    %cst_59 = arith.constant 0.000000e+00 : f32
    %158 = vector.broadcast %cst_59 : f32 to vector<4x32xf32>
    %159 = vector.extract_strided_slice %156 {offsets = [0, 0], sizes = [4, 128], strides = [1, 1]} : vector<16x128xf32> to vector<4x128xf32>
    %cst_60 = arith.constant dense<0.000000e+00> : vector<4x128xf32>
    %160 = tpu.matmul %157, %152, %cst_60 {dimension_numbers = #tpu.dot_dimension_numbers<[1], [0], [0], [1], [0, 0, 1, 1], [], []>} : vector<4x32xf32>, vector<32x128xf32>, vector<4x128xf32> -> vector<4x128xf32>
    %161 = arith.addf %159, %160 : vector<4x128xf32>
    %162 = arith.negf %161 : vector<4x128xf32>
    %163 = math.exp %162 : vector<4x128xf32>
    %cst_61 = arith.constant 1.000000e+00 : f32
    %164 = vector.broadcast %cst_61 : f32 to vector<4x128xf32>
    %165 = arith.addf %164, %163 : vector<4x128xf32>
    %166 = arith.divf %164, %165 : vector<4x128xf32>
    %167 = math.tanh %161 : vector<4x128xf32>
    %168 = vector.extract_strided_slice %166 {offsets = [0, 0], sizes = [4, 32], strides = [1, 1]} : vector<4x128xf32> to vector<4x32xf32>
    %169 = vector.extract_strided_slice %166 {offsets = [0, 32], sizes = [4, 32], strides = [1, 1]} : vector<4x128xf32> to vector<4x32xf32>
    %170 = vector.extract_strided_slice %167 {offsets = [0, 64], sizes = [4, 32], strides = [1, 1]} : vector<4x128xf32> to vector<4x32xf32>
    %171 = vector.extract_strided_slice %166 {offsets = [0, 96], sizes = [4, 32], strides = [1, 1]} : vector<4x128xf32> to vector<4x32xf32>
    %172 = arith.mulf %169, %158 : vector<4x32xf32>
    %173 = arith.mulf %168, %170 : vector<4x32xf32>
    %174 = arith.addf %172, %173 : vector<4x32xf32>
    %175 = math.tanh %174 : vector<4x32xf32>
    %176 = arith.mulf %171, %175 : vector<4x32xf32>
    %177 = vector.extract_strided_slice %156 {offsets = [4, 0], sizes = [4, 128], strides = [1, 1]} : vector<16x128xf32> to vector<4x128xf32>
    %cst_62 = arith.constant dense<0.000000e+00> : vector<4x128xf32>
    %178 = tpu.matmul %176, %152, %cst_62 {dimension_numbers = #tpu.dot_dimension_numbers<[1], [0], [0], [1], [0, 0, 1, 1], [], []>} : vector<4x32xf32>, vector<32x128xf32>, vector<4x128xf32> -> vector<4x128xf32>
    %179 = arith.addf %177, %178 : vector<4x128xf32>
    %180 = arith.negf %179 : vector<4x128xf32>
    %181 = math.exp %180 : vector<4x128xf32>
    %cst_63 = arith.constant 1.000000e+00 : f32
    %182 = vector.broadcast %cst_63 : f32 to vector<4x128xf32>
    %183 = arith.addf %182, %181 : vector<4x128xf32>
    %184 = arith.divf %182, %183 : vector<4x128xf32>
    %185 = math.tanh %179 : vector<4x128xf32>
    %186 = vector.extract_strided_slice %184 {offsets = [0, 0], sizes = [4, 32], strides = [1, 1]} : vector<4x128xf32> to vector<4x32xf32>
    %187 = vector.extract_strided_slice %184 {offsets = [0, 32], sizes = [4, 32], strides = [1, 1]} : vector<4x128xf32> to vector<4x32xf32>
    %188 = vector.extract_strided_slice %185 {offsets = [0, 64], sizes = [4, 32], strides = [1, 1]} : vector<4x128xf32> to vector<4x32xf32>
    %189 = vector.extract_strided_slice %184 {offsets = [0, 96], sizes = [4, 32], strides = [1, 1]} : vector<4x128xf32> to vector<4x32xf32>
    %190 = arith.mulf %187, %174 : vector<4x32xf32>
    %191 = arith.mulf %186, %188 : vector<4x32xf32>
    %192 = arith.addf %190, %191 : vector<4x32xf32>
    %193 = math.tanh %192 : vector<4x32xf32>
    %194 = arith.mulf %189, %193 : vector<4x32xf32>
    %195 = vector.extract_strided_slice %156 {offsets = [8, 0], sizes = [4, 128], strides = [1, 1]} : vector<16x128xf32> to vector<4x128xf32>
    %cst_64 = arith.constant dense<0.000000e+00> : vector<4x128xf32>
    %196 = tpu.matmul %194, %152, %cst_64 {dimension_numbers = #tpu.dot_dimension_numbers<[1], [0], [0], [1], [0, 0, 1, 1], [], []>} : vector<4x32xf32>, vector<32x128xf32>, vector<4x128xf32> -> vector<4x128xf32>
    %197 = arith.addf %195, %196 : vector<4x128xf32>
    %198 = arith.negf %197 : vector<4x128xf32>
    %199 = math.exp %198 : vector<4x128xf32>
    %cst_65 = arith.constant 1.000000e+00 : f32
    %200 = vector.broadcast %cst_65 : f32 to vector<4x128xf32>
    %201 = arith.addf %200, %199 : vector<4x128xf32>
    %202 = arith.divf %200, %201 : vector<4x128xf32>
    %203 = math.tanh %197 : vector<4x128xf32>
    %204 = vector.extract_strided_slice %202 {offsets = [0, 0], sizes = [4, 32], strides = [1, 1]} : vector<4x128xf32> to vector<4x32xf32>
    %205 = vector.extract_strided_slice %202 {offsets = [0, 32], sizes = [4, 32], strides = [1, 1]} : vector<4x128xf32> to vector<4x32xf32>
    %206 = vector.extract_strided_slice %203 {offsets = [0, 64], sizes = [4, 32], strides = [1, 1]} : vector<4x128xf32> to vector<4x32xf32>
    %207 = vector.extract_strided_slice %202 {offsets = [0, 96], sizes = [4, 32], strides = [1, 1]} : vector<4x128xf32> to vector<4x32xf32>
    %208 = arith.mulf %205, %192 : vector<4x32xf32>
    %209 = arith.mulf %204, %206 : vector<4x32xf32>
    %210 = arith.addf %208, %209 : vector<4x32xf32>
    %211 = math.tanh %210 : vector<4x32xf32>
    %212 = arith.mulf %207, %211 : vector<4x32xf32>
    %213 = vector.extract_strided_slice %156 {offsets = [12, 0], sizes = [4, 128], strides = [1, 1]} : vector<16x128xf32> to vector<4x128xf32>
    %cst_66 = arith.constant dense<0.000000e+00> : vector<4x128xf32>
    %214 = tpu.matmul %212, %152, %cst_66 {dimension_numbers = #tpu.dot_dimension_numbers<[1], [0], [0], [1], [0, 0, 1, 1], [], []>} : vector<4x32xf32>, vector<32x128xf32>, vector<4x128xf32> -> vector<4x128xf32>
    %215 = arith.addf %213, %214 : vector<4x128xf32>
    %216 = arith.negf %215 : vector<4x128xf32>
    %217 = math.exp %216 : vector<4x128xf32>
    %cst_67 = arith.constant 1.000000e+00 : f32
    %218 = vector.broadcast %cst_67 : f32 to vector<4x128xf32>
    %219 = arith.addf %218, %217 : vector<4x128xf32>
    %220 = arith.divf %218, %219 : vector<4x128xf32>
    %221 = math.tanh %215 : vector<4x128xf32>
    %222 = vector.extract_strided_slice %220 {offsets = [0, 0], sizes = [4, 32], strides = [1, 1]} : vector<4x128xf32> to vector<4x32xf32>
    %223 = vector.extract_strided_slice %220 {offsets = [0, 32], sizes = [4, 32], strides = [1, 1]} : vector<4x128xf32> to vector<4x32xf32>
    %224 = vector.extract_strided_slice %221 {offsets = [0, 64], sizes = [4, 32], strides = [1, 1]} : vector<4x128xf32> to vector<4x32xf32>
    %225 = vector.extract_strided_slice %220 {offsets = [0, 96], sizes = [4, 32], strides = [1, 1]} : vector<4x128xf32> to vector<4x32xf32>
    %226 = arith.mulf %223, %210 : vector<4x32xf32>
    %227 = arith.mulf %222, %224 : vector<4x32xf32>
    %228 = arith.addf %226, %227 : vector<4x32xf32>
    %229 = math.tanh %228 : vector<4x32xf32>
    %230 = arith.mulf %225, %229 : vector<4x32xf32>
    %c0_68 = arith.constant 0 : index
    %c0_69 = arith.constant 0 : index
    %231 = vector.load %arg15[%c0_68, %c0_69] : memref<64x156xf32, #tpu.memory_space<vmem>>, vector<64x156xf32>
    %232 = vector.extract_strided_slice %231 {offsets = [0, 0], sizes = [32, 156], strides = [1, 1]} : vector<64x156xf32> to vector<32x156xf32>
    %cst_70 = arith.constant dense<0.000000e+00> : vector<4x156xf32>
    %233 = tpu.matmul %150, %232, %cst_70 {dimension_numbers = #tpu.dot_dimension_numbers<[1], [0], [0], [1], [0, 0, 1, 1], [], []>} : vector<4x32xf32>, vector<32x156xf32>, vector<4x156xf32> -> vector<4x156xf32>
    %234 = vector.extract_strided_slice %231 {offsets = [32, 0], sizes = [32, 156], strides = [1, 1]} : vector<64x156xf32> to vector<32x156xf32>
    %cst_71 = arith.constant dense<0.000000e+00> : vector<4x156xf32>
    %235 = tpu.matmul %230, %234, %cst_71 {dimension_numbers = #tpu.dot_dimension_numbers<[1], [0], [0], [1], [0, 0, 1, 1], [], []>} : vector<4x32xf32>, vector<32x156xf32>, vector<4x156xf32> -> vector<4x156xf32>
    %236 = arith.addf %233, %235 : vector<4x156xf32>
    %c0_72 = arith.constant 0 : index
    %c0_73 = arith.constant 0 : index
    %237 = vector.load %arg16[%c0_72, %c0_73] : memref<1x156xf32, #tpu.memory_space<vmem>>, vector<1x156xf32>
    %238 = vector.broadcast %237 : vector<1x156xf32> to vector<4x156xf32>
    %239 = arith.addf %236, %238 : vector<4x156xf32>
    %c0_74 = arith.constant 0 : index
    %c0_75 = arith.constant 0 : index
    %240 = vector.load %arg17[%c0_74, %c0_75] : memref<4x156xf32, #tpu.memory_space<vmem>>, vector<4x156xf32>
    tpu.vector_store %arg17[%c0_74, %c0_75], %239 {strides = array<i32>} : memref<4x156xf32, #tpu.memory_space<vmem>>, vector<4x156xf32>,
    return
  }
}

</mosaic_0001>

<llo_original>
// kernel: gat_lstm_forward.1
$region0: #{gat_lstm_forward.1}
  #allocation0 [shape = 'u32[]', space=smem, size = 0x4, offset = 0x4, fixed_abs, tag = 'smem constant byte address 0x4 - core index']
  #allocation1 [shape = 'u32[72,128]{1,0:T(1,128)}', space=vmem, size = 0x9000, scoped, tag = 'internal scratch']
  %s0 = inlined_call_operand.vmem [shape: f32[156,16], index: 0, kind: input, shape index: {}]
  %s1 = inlined_call_operand.vmem [shape: f32[16,156], index: 1, kind: input, shape index: {}]
  %s2 = inlined_call_operand.vmem [shape: f32[156,156], index: 2, kind: input, shape index: {}]
  %s3 = inlined_call_operand.vmem [shape: f32[16,156], index: 3, kind: input, shape index: {}]
  %s4 = inlined_call_operand.vmem [shape: f32[16,156], index: 4, kind: input, shape index: {}]
  %s5 = inlined_call_operand.vmem [shape: f32[16,1], index: 5, kind: input, shape index: {}]
  %s6 = inlined_call_operand.vmem [shape: f32[1,16], index: 6, kind: input, shape index: {}]
  %s7 = inlined_call_operand.vmem [shape: f32[16,1], index: 7, kind: input, shape index: {}]
  %s8 = inlined_call_operand.vmem [shape: f32[1,16], index: 8, kind: input, shape index: {}]
  %s9 = inlined_call_operand.vmem [shape: f32[156,128], index: 9, kind: input, shape index: {}]
  %s10 = inlined_call_operand.vmem [shape: f32[32,128], index: 10, kind: input, shape index: {}]
  %s11 = inlined_call_operand.vmem [shape: f32[1,128], index: 11, kind: input, shape index: {}]
  %s12 = inlined_call_operand.vmem [shape: f32[156,128], index: 12, kind: input, shape index: {}]
  %s13 = inlined_call_operand.vmem [shape: f32[32,128], index: 13, kind: input, shape index: {}]
  %s14 = inlined_call_operand.vmem [shape: f32[1,128], index: 14, kind: input, shape index: {}]
  %s15 = inlined_call_operand.vmem [shape: f32[64,156], index: 15, kind: input, shape index: {}]
  %s16 = inlined_call_operand.vmem [shape: f32[1,156], index: 16, kind: input, shape index: {}]
  %s17 = inlined_call_operand.hbm [shape: f32[4,156], index: 17, kind: output, shape index: {}]
  %s18 = sld [smem:[#allocation0]]
  $region78: #{gat_lstm_forward.1} parent=0
    _
  %s20 = ssub.s32 1, %s18
  %s21 = scalar_select 0, %s20, %s18
  $region1: #{gat_lstm_forward.1} parent=0
    #allocation2 [shape = 'u8[4096]{0}', space=vmem, size = 0x1000, scoped, tag = 'output window, operand 0, single buffered']
    #allocation3 [shape = 's32[1]{0}', space=sflag, size = 0x4, scoped, tag = 'scoped memory for gat_lstm_forward.1']
    %22 = vsyncpa [#allocation3], 0
    // Predicated region
    $region2: #{gat_lstm_forward.1} parent=1 // pred_check
      _
    $region3: #{gat_lstm_forward.1} parent=1 // pred_check_branch
      %24 = sbr.rel (0) target = $region5
    $region4: #{gat_lstm_forward.1} parent=1 // pred_region
      _
    $region5: #{gat_lstm_forward.1} parent=1 // pred_fallthru
      _
    // Predicated region
    $region6: #{gat_lstm_forward.1} parent=1 // pred_check
      _
    $region7: #{gat_lstm_forward.1} parent=1 // pred_check_branch
      %26 = sbr.rel (0) target = $region9
    $region8: #{gat_lstm_forward.1} parent=1 // pred_region
      _
    $region9: #{gat_lstm_forward.1} parent=1 // pred_fallthru
      _
    // Predicated region
    $region10: #{gat_lstm_forward.1} parent=1 // pred_check
      _
    $region11: #{gat_lstm_forward.1} parent=1 // pred_check_branch
      %28 = sbr.rel (0) target = $region13
    $region12: #{gat_lstm_forward.1} parent=1 // pred_region
      _
    $region13: #{gat_lstm_forward.1} parent=1 // pred_fallthru
      _
    // Predicated region
    $region14: #{gat_lstm_forward.1} parent=1 // pred_check
      _
    $region15: #{gat_lstm_forward.1} parent=1 // pred_check_branch
      %30 = sbr.rel (0) target = $region17
    $region16: #{gat_lstm_forward.1} parent=1 // pred_region
      _
    $region17: #{gat_lstm_forward.1} parent=1 // pred_fallthru
      _
    // Predicated region
    $region18: #{gat_lstm_forward.1} parent=1 // pred_check
      _
    $region19: #{gat_lstm_forward.1} parent=1 // pred_check_branch
      %32 = sbr.rel (0) target = $region21
    $region20: #{gat_lstm_forward.1} parent=1 // pred_region
      _
    $region21: #{gat_lstm_forward.1} parent=1 // pred_fallthru
      _
    // Predicated region
    $region22: #{gat_lstm_forward.1} parent=1 // pred_check
      _
    $region23: #{gat_lstm_forward.1} parent=1 // pred_check_branch
      %34 = sbr.rel (0) target = $region25
    $region24: #{gat_lstm_forward.1} parent=1 // pred_region
      _
    $region25: #{gat_lstm_forward.1} parent=1 // pred_fallthru
      _
    // Predicated region
    $region26: #{gat_lstm_forward.1} parent=1 // pred_check
      _
    $region27: #{gat_lstm_forward.1} parent=1 // pred_check_branch
      %36 = sbr.rel (0) target = $region29
    $region28: #{gat_lstm_forward.1} parent=1 // pred_region
      _
    $region29: #{gat_lstm_forward.1} parent=1 // pred_fallthru
      _
    // Predicated region
    $region30: #{gat_lstm_forward.1} parent=1 // pred_check
      _
    $region31: #{gat_lstm_forward.1} parent=1 // pred_check_branch
      %38 = sbr.rel (0) target = $region33
    $region32: #{gat_lstm_forward.1} parent=1 // pred_region
      _
    $region33: #{gat_lstm_forward.1} parent=1 // pred_fallthru
      _
    // Predicated region
    $region34: #{gat_lstm_forward.1} parent=1 // pred_check
      _
    $region35: #{gat_lstm_forward.1} parent=1 // pred_check_branch
      %40 = sbr.rel (0) target = $region37
    $region36: #{gat_lstm_forward.1} parent=1 // pred_region
      _
    $region37: #{gat_lstm_forward.1} parent=1 // pred_fallthru
      _
    // Predicated region
    $region38: #{gat_lstm_forward.1} parent=1 // pred_check
      _
    $region39: #{gat_lstm_forward.1} parent=1 // pred_check_branch
      %42 = sbr.rel (0) target = $region41
    $region40: #{gat_lstm_forward.1} parent=1 // pred_region
      _
    $region41: #{gat_lstm_forward.1} parent=1 // pred_fallthru
      _
    // Predicated region
    $region42: #{gat_lstm_forward.1} parent=1 // pred_check
      _
    $region43: #{gat_lstm_forward.1} parent=1 // pred_check_branch
      %44 = sbr.rel (0) target = $region45
    $region44: #{gat_lstm_forward.1} parent=1 // pred_region
      _
    $region45: #{gat_lstm_forward.1} parent=1 // pred_fallthru
      _
    // Predicated region
    $region46: #{gat_lstm_forward.1} parent=1 // pred_check
      _
    $region47: #{gat_lstm_forward.1} parent=1 // pred_check_branch
      %46 = sbr.rel (0) target = $region49
    $region48: #{gat_lstm_forward.1} parent=1 // pred_region
      _
    $region49: #{gat_lstm_forward.1} parent=1 // pred_fallthru
      _
    // Predicated region
    $region50: #{gat_lstm_forward.1} parent=1 // pred_check
      _
    $region51: #{gat_lstm_forward.1} parent=1 // pred_check_branch
      %48 = sbr.rel (0) target = $region53
    $region52: #{gat_lstm_forward.1} parent=1 // pred_region
      _
    $region53: #{gat_lstm_forward.1} parent=1 // pred_fallthru
      _
    // Predicated region
    $region54: #{gat_lstm_forward.1} parent=1 // pred_check
      _
    $region55: #{gat_lstm_forward.1} parent=1 // pred_check_branch
      %50 = sbr.rel (0) target = $region57
    $region56: #{gat_lstm_forward.1} parent=1 // pred_region
      _
    $region57: #{gat_lstm_forward.1} parent=1 // pred_fallthru
      _
    // Predicated region
    $region58: #{gat_lstm_forward.1} parent=1 // pred_check
      _
    $region59: #{gat_lstm_forward.1} parent=1 // pred_check_branch
      %52 = sbr.rel (0) target = $region61
    $region60: #{gat_lstm_forward.1} parent=1 // pred_region
      _
    $region61: #{gat_lstm_forward.1} parent=1 // pred_fallthru
      _
    // Predicated region
    $region62: #{gat_lstm_forward.1} parent=1 // pred_check
      _
    $region63: #{gat_lstm_forward.1} parent=1 // pred_check_branch
      %54 = sbr.rel (0) target = $region65
    $region64: #{gat_lstm_forward.1} parent=1 // pred_region
      _
    $region65: #{gat_lstm_forward.1} parent=1 // pred_fallthru
      _
    // Predicated region
    $region66: #{gat_lstm_forward.1} parent=1 // pred_check
      _
    $region67: #{gat_lstm_forward.1} parent=1 // pred_check_branch
      %56 = sbr.rel (0) target = $region69
    $region68: #{gat_lstm_forward.1} parent=1 // pred_region
      _
    $region69: #{gat_lstm_forward.1} parent=1 // pred_fallthru
      _
    %v57 = vld [vmem:[%s0] sm:$0xff]
    %v58 = vld [vmem:[%s0 + $0x8] sm:$0xff]
    %v59 = vld [vmem:[%s0 + $0x10] sm:$0xff]
    %v60 = vld [vmem:[%s0 + $0x18] sm:$0xff]
    %v61 = vld [vmem:[%s0 + $0x20] sm:$0xff]
    %v62 = vld [vmem:[%s0 + $0x28] sm:$0xff]
    %v63 = vld [vmem:[%s0 + $0x30] sm:$0xff]
    %v64 = vld [vmem:[%s0 + $0x38] sm:$0xff]
    %v65 = vld [vmem:[%s0 + $0x40] sm:$0xff]
    %v66 = vld [vmem:[%s0 + $0x48] sm:$0xff]
    %v67 = vld [vmem:[%s0 + $0x50] sm:$0xff]
    %v68 = vld [vmem:[%s0 + $0x58] sm:$0xff]
    %v69 = vld [vmem:[%s0 + $0x60] sm:$0xff]
    %v70 = vld [vmem:[%s0 + $0x68] sm:$0xff]
    %v71 = vld [vmem:[%s0 + $0x70] sm:$0xff]
    %v72 = vld [vmem:[%s0 + $0x78] sm:$0xff]
    %v73 = vld [vmem:[%s0 + $0x80] sm:$0xff]
    %v74 = vld [vmem:[%s0 + $0x88] sm:$0xff]
    %v75 = vld [vmem:[%s0 + $0x90] sm:$0xff]
    %v76 = vld [vmem:[%s0 + $0x98] sm:$0xf]
    %v77 = vld [vmem:[%s1] sm:$0xff]
    %v78 = vld [vmem:[%s1 + $0x8] sm:$0xff]
    %v79 = vld [vmem:[%s1 + $0x10] sm:$0xff]
    %v80 = vld [vmem:[%s1 + $0x18] sm:$0xff]
    %v81 = vld [vmem:[%s2] sm:$0xff]
    %v82 = vld [vmem:[%s2 + $0x8] sm:$0xff]
    %v83 = vld [vmem:[%s2 + $0x10] sm:$0xff]
    %v84 = vld [vmem:[%s2 + $0x18] sm:$0xff]
    %v85 = vld [vmem:[%s2 + $0x20] sm:$0xff]
    %v86 = vld [vmem:[%s2 + $0x28] sm:$0xff]
    %v87 = vld [vmem:[%s2 + $0x30] sm:$0xff]
    %v88 = vld [vmem:[%s2 + $0x38] sm:$0xff]
    %v89 = vld [vmem:[%s2 + $0x40] sm:$0xff]
    %v90 = vld [vmem:[%s2 + $0x48] sm:$0xff]
    %v91 = vld [vmem:[%s2 + $0x50] sm:$0xff]
    %v92 = vld [vmem:[%s2 + $0x58] sm:$0xff]
    %v93 = vld [vmem:[%s2 + $0x60] sm:$0xff]
    %v94 = vld [vmem:[%s2 + $0x68] sm:$0xff]
    %v95 = vld [vmem:[%s2 + $0x70] sm:$0xff]
    %v96 = vld [vmem:[%s2 + $0x78] sm:$0xff]
    %v97 = vld [vmem:[%s2 + $0x80] sm:$0xff]
    %v98 = vld [vmem:[%s2 + $0x88] sm:$0xff]
    %v99 = vld [vmem:[%s2 + $0x90] sm:$0xff]
    %v100 = vld [vmem:[%s2 + $0x98] sm:$0xff]
    %v101 = vld [vmem:[%s2 + $0xa0] sm:$0xff]
    %v102 = vld [vmem:[%s2 + $0xa8] sm:$0xff]
    %v103 = vld [vmem:[%s2 + $0xb0] sm:$0xff]
    %v104 = vld [vmem:[%s2 + $0xb8] sm:$0xff]
    %v105 = vld [vmem:[%s2 + $0xc0] sm:$0xff]
    %v106 = vld [vmem:[%s2 + $0xc8] sm:$0xff]
    %v107 = vld [vmem:[%s2 + $0xd0] sm:$0xff]
    %v108 = vld [vmem:[%s2 + $0xd8] sm:$0xff]
    %v109 = vld [vmem:[%s2 + $0xe0] sm:$0xff]
    %v110 = vld [vmem:[%s2 + $0xe8] sm:$0xff]
    %v111 = vld [vmem:[%s2 + $0xf0] sm:$0xff]
    %v112 = vld [vmem:[%s2 + $0xf8] sm:$0xff]
    %v113 = vld [vmem:[%s2 + $0x100] sm:$0xff]
    %v114 = vld [vmem:[%s2 + $0x108] sm:$0xff]
    %v115 = vld [vmem:[%s2 + $0x110] sm:$0xff]
    %v116 = vld [vmem:[%s2 + $0x118] sm:$0xff]
    %v117 = vld [vmem:[%s2 + $0x120] sm:$0xff]
    %v118 = vld [vmem:[%s2 + $0x128] sm:$0xff]
    %v119 = vld [vmem:[%s2 + $0x130] sm:$0xf]
    %v120 = vld [vmem:[%s2 + $0x138] sm:$0xf]
    %v121 = vld [vmem:[%s5] sm:$0xff]
    %v122 = vld [vmem:[%s5 + $0x8] sm:$0xff]
    %v123 = vld [vmem:[%s6] sm:$0x1]
    %125 = vset.pattern.permute.xlu0 0
    %126 = vperm.xlu0 %125, %v121
    %v127 = vpop.permute.xlu0 %126
    %130 = vset.pattern.permute.xlu0 0
    %131 = vperm.xlu0 %130, %v122
    %v132 = vpop.permute.xlu0 %131
    %v134 = vmul.f32 %v77, %v127
    %v135 = vmul.f32 %v78, %v127
    %v136 = vmul.f32 %v79, %v132
    %v137 = vmul.f32 %v80, %v132
    %v138 = vadd.f32 %v134, %v136
    %v139 = vrot.slane %v138, 4
    %v140 = vadd.f32 %v138, %v139
    %v141 = vrot.slane %v140, 2
    %v142 = vadd.f32 %v140, %v141
    %v143 = vrot.slane %v142, 1
    %v144 = vadd.f32 %v142, %v143
    %vm145 = vcmask 228352
    %v146 = vsel %vm145, %v135, 0.0
    %v147 = vsel %vm145, %v137, 0.0
    %v148 = vadd.f32 %v146, %v147
    %v149 = vrot.slane %v148, 4
    %v150 = vadd.f32 %v148, %v149
    %v151 = vrot.slane %v150, 2
    %v152 = vadd.f32 %v150, %v151
    %v153 = vrot.slane %v152, 1
    %v154 = vadd.f32 %v152, %v153
    %v156 = vperm.slane %v123, 0
    %v158 = vmul.f32 %v57, %v156
    %v159 = vmul.f32 %v58, %v156
    %v160 = vmul.f32 %v59, %v156
    %v161 = vmul.f32 %v60, %v156
    %v162 = vmul.f32 %v61, %v156
    %v163 = vmul.f32 %v62, %v156
    %v164 = vmul.f32 %v63, %v156
    %v165 = vmul.f32 %v64, %v156
    %v166 = vmul.f32 %v65, %v156
    %v167 = vmul.f32 %v66, %v156
    %v168 = vmul.f32 %v67, %v156
    %v169 = vmul.f32 %v68, %v156
    %v170 = vmul.f32 %v69, %v156
    %v171 = vmul.f32 %v70, %v156
    %v172 = vmul.f32 %v71, %v156
    %v173 = vmul.f32 %v72, %v156
    %v174 = vmul.f32 %v73, %v156
    %v175 = vmul.f32 %v74, %v156
    %v176 = vmul.f32 %v75, %v156
    %v177 = vmul.f32 %v76, %v156
    %vm178 = vcmask 130048
    %v179 = vsel %vm178, %v158, 0.0
    %180 = vadd.xlane.f32.xlu0 %v179
    %v181 = vpop.xlane.xlu0 %180
    %v182 = vsel %vm178, %v159, 0.0
    %183 = vadd.xlane.f32.xlu0 %v182
    %v184 = vpop.xlane.xlu0 %183
    %v185 = vsel %vm178, %v160, 0.0
    %186 = vadd.xlane.f32.xlu0 %v185
    %v187 = vpop.xlane.xlu0 %186
    %v188 = vsel %vm178, %v161, 0.0
    %189 = vadd.xlane.f32.xlu0 %v188
    %v190 = vpop.xlane.xlu0 %189
    %v191 = vsel %vm178, %v162, 0.0
    %192 = vadd.xlane.f32.xlu0 %v191
    %v193 = vpop.xlane.xlu0 %192
    %v194 = vsel %vm178, %v163, 0.0
    %195 = vadd.xlane.f32.xlu0 %v194
    %v196 = vpop.xlane.xlu0 %195
    %v197 = vsel %vm178, %v164, 0.0
    %198 = vadd.xlane.f32.xlu0 %v197
    %v199 = vpop.xlane.xlu0 %198
    %v200 = vsel %vm178, %v165, 0.0
    %201 = vadd.xlane.f32.xlu0 %v200
    %v202 = vpop.xlane.xlu0 %201
    %v203 = vsel %vm178, %v166, 0.0
    %204 = vadd.xlane.f32.xlu0 %v203
    %v205 = vpop.xlane.xlu0 %204
    %v206 = vsel %vm178, %v167, 0.0
    %207 = vadd.xlane.f32.xlu0 %v206
    %v208 = vpop.xlane.xlu0 %207
    %v209 = vsel %vm178, %v168, 0.0
    %210 = vadd.xlane.f32.xlu0 %v209
    %v211 = vpop.xlane.xlu0 %210
    %v212 = vsel %vm178, %v169, 0.0
    %213 = vadd.xlane.f32.xlu0 %v212
    %v214 = vpop.xlane.xlu0 %213
    %v215 = vsel %vm178, %v170, 0.0
    %216 = vadd.xlane.f32.xlu0 %v215
    %v217 = vpop.xlane.xlu0 %216
    %v218 = vsel %vm178, %v171, 0.0
    %219 = vadd.xlane.f32.xlu0 %v218
    %v220 = vpop.xlane.xlu0 %219
    %v221 = vsel %vm178, %v172, 0.0
    %222 = vadd.xlane.f32.xlu0 %v221
    %v223 = vpop.xlane.xlu0 %222
    %v224 = vsel %vm178, %v173, 0.0
    %225 = vadd.xlane.f32.xlu0 %v224
    %v226 = vpop.xlane.xlu0 %225
    %v227 = vsel %vm178, %v174, 0.0
    %228 = vadd.xlane.f32.xlu0 %v227
    %v229 = vpop.xlane.xlu0 %228
    %v230 = vsel %vm178, %v175, 0.0
    %231 = vadd.xlane.f32.xlu0 %v230
    %v232 = vpop.xlane.xlu0 %231
    %v233 = vsel %vm178, %v176, 0.0
    %234 = vadd.xlane.f32.xlu0 %v233
    %v235 = vpop.xlane.xlu0 %234
    %vm236 = vcmask 125952
    %v237 = vsel %vm236, %v177, 0.0
    %238 = vadd.xlane.f32.xlu0 %v237
    %v239 = vpop.xlane.xlu0 %238
    %v240 = vadd.f32 %v181, %v144
    %v241 = vadd.f32 %v181, %v154
    %v242 = vadd.f32 %v184, %v144
    %v243 = vadd.f32 %v184, %v154
    %v244 = vadd.f32 %v187, %v144
    %v245 = vadd.f32 %v187, %v154
    %v246 = vadd.f32 %v190, %v144
    %v247 = vadd.f32 %v190, %v154
    %v248 = vadd.f32 %v193, %v144
    %v249 = vadd.f32 %v193, %v154
    %v250 = vadd.f32 %v196, %v144
    %v251 = vadd.f32 %v196, %v154
    %v252 = vadd.f32 %v199, %v144
    %v253 = vadd.f32 %v199, %v154
    %v254 = vadd.f32 %v202, %v144
    %v255 = vadd.f32 %v202, %v154
    %v256 = vadd.f32 %v205, %v144
    %v257 = vadd.f32 %v205, %v154
    %v258 = vadd.f32 %v208, %v144
    %v259 = vadd.f32 %v208, %v154
    %v260 = vadd.f32 %v211, %v144
    %v261 = vadd.f32 %v211, %v154
    %v262 = vadd.f32 %v214, %v144
    %v263 = vadd.f32 %v214, %v154
    %v264 = vadd.f32 %v217, %v144
    %v265 = vadd.f32 %v217, %v154
    %v266 = vadd.f32 %v220, %v144
    %v267 = vadd.f32 %v220, %v154
    %v268 = vadd.f32 %v223, %v144
    %v269 = vadd.f32 %v223, %v154
    %v270 = vadd.f32 %v226, %v144
    %v271 = vadd.f32 %v226, %v154
    %v272 = vadd.f32 %v229, %v144
    %v273 = vadd.f32 %v229, %v154
    %v274 = vadd.f32 %v232, %v144
    %v275 = vadd.f32 %v232, %v154
    %v276 = vadd.f32 %v235, %v144
    %v277 = vadd.f32 %v235, %v154
    %v278 = vadd.f32 %v239, %v144
    %v279 = vadd.f32 %v239, %v154
    %vm280 = vcmp.gt.f32.partialorder %v240, 0.0
    %vm281 = vcmp.gt.f32.partialorder %v241, 0.0
    %vm282 = vcmp.gt.f32.partialorder %v242, 0.0
    %vm283 = vcmp.gt.f32.partialorder %v243, 0.0
    %vm284 = vcmp.gt.f32.partialorder %v244, 0.0
    %vm285 = vcmp.gt.f32.partialorder %v245, 0.0
    %vm286 = vcmp.gt.f32.partialorder %v246, 0.0
    %vm287 = vcmp.gt.f32.partialorder %v247, 0.0
    %vm288 = vcmp.gt.f32.partialorder %v248, 0.0
    %vm289 = vcmp.gt.f32.partialorder %v249, 0.0
    %vm290 = vcmp.gt.f32.partialorder %v250, 0.0
    %vm291 = vcmp.gt.f32.partialorder %v251, 0.0
    %vm292 = vcmp.gt.f32.partialorder %v252, 0.0
    %vm293 = vcmp.gt.f32.partialorder %v253, 0.0
    %vm294 = vcmp.gt.f32.partialorder %v254, 0.0
    %vm295 = vcmp.gt.f32.partialorder %v255, 0.0
    %vm296 = vcmp.gt.f32.partialorder %v256, 0.0
    %vm297 = vcmp.gt.f32.partialorder %v257, 0.0
    %vm298 = vcmp.gt.f32.partialorder %v258, 0.0
    %vm299 = vcmp.gt.f32.partialorder %v259, 0.0
    %vm300 = vcmp.gt.f32.partialorder %v260, 0.0
    %vm301 = vcmp.gt.f32.partialorder %v261, 0.0
    %vm302 = vcmp.gt.f32.partialorder %v262, 0.0
    %vm303 = vcmp.gt.f32.partialorder %v263, 0.0
    %vm304 = vcmp.gt.f32.partialorder %v264, 0.0
    %vm305 = vcmp.gt.f32.partialorder %v265, 0.0
    %vm306 = vcmp.gt.f32.partialorder %v266, 0.0
    %vm307 = vcmp.gt.f32.partialorder %v267, 0.0
    %vm308 = vcmp.gt.f32.partialorder %v268, 0.0
    %vm309 = vcmp.gt.f32.partialorder %v269, 0.0
    %vm310 = vcmp.gt.f32.partialorder %v270, 0.0
    %vm311 = vcmp.gt.f32.partialorder %v271, 0.0
    %vm312 = vcmp.gt.f32.partialorder %v272, 0.0
    %vm313 = vcmp.gt.f32.partialorder %v273, 0.0
    %vm314 = vcmp.gt.f32.partialorder %v274, 0.0
    %vm315 = vcmp.gt.f32.partialorder %v275, 0.0
    %vm316 = vcmp.gt.f32.partialorder %v276, 0.0
    %vm317 = vcmp.gt.f32.partialorder %v277, 0.0
    %vm318 = vcmp.gt.f32.partialorder %v278, 0.0
    %vm319 = vcmp.gt.f32.partialorder %v279, 0.0
    %v320 = vmul.f32 %v240, 0.2
    %v321 = vmul.f32 %v241, 0.2
    %v322 = vmul.f32 %v242, 0.2
    %v323 = vmul.f32 %v243, 0.2
    %v324 = vmul.f32 %v244, 0.2
    %v325 = vmul.f32 %v245, 0.2
    %v326 = vmul.f32 %v246, 0.2
    %v327 = vmul.f32 %v247, 0.2
    %v328 = vmul.f32 %v248, 0.2
    %v329 = vmul.f32 %v249, 0.2
    %v330 = vmul.f32 %v250, 0.2
    %v331 = vmul.f32 %v251, 0.2
    %v332 = vmul.f32 %v252, 0.2
    %v333 = vmul.f32 %v253, 0.2
    %v334 = vmul.f32 %v254, 0.2
    %v335 = vmul.f32 %v255, 0.2
    %v336 = vmul.f32 %v256, 0.2
    %v337 = vmul.f32 %v257, 0.2
    %v338 = vmul.f32 %v258, 0.2
    %v339 = vmul.f32 %v259, 0.2
    %v340 = vmul.f32 %v260, 0.2
    %v341 = vmul.f32 %v261, 0.2
    %v342 = vmul.f32 %v262, 0.2
    %v343 = vmul.f32 %v263, 0.2
    %v344 = vmul.f32 %v264, 0.2
    %v345 = vmul.f32 %v265, 0.2
    %v346 = vmul.f32 %v266, 0.2
    %v347 = vmul.f32 %v267, 0.2
    %v348 = vmul.f32 %v268, 0.2
    %v349 = vmul.f32 %v269, 0.2
    %v350 = vmul.f32 %v270, 0.2
    %v351 = vmul.f32 %v271, 0.2
    %v352 = vmul.f32 %v272, 0.2
    %v353 = vmul.f32 %v273, 0.2
    %v354 = vmul.f32 %v274, 0.2
    %v355 = vmul.f32 %v275, 0.2
    %v356 = vmul.f32 %v276, 0.2
    %v357 = vmul.f32 %v277, 0.2
    %v358 = vmul.f32 %v278, 0.2
    %v359 = vmul.f32 %v279, 0.2
    %v360 = vsel %vm280, %v240, %v320
    %v361 = vsel %vm281, %v241, %v321
    %v362 = vsel %vm282, %v242, %v322
    %v363 = vsel %vm283, %v243, %v323
    %v364 = vsel %vm284, %v244, %v324
    %v365 = vsel %vm285, %v245, %v325
    %v366 = vsel %vm286, %v246, %v326
    %v367 = vsel %vm287, %v247, %v327
    %v368 = vsel %vm288, %v248, %v328
    %v369 = vsel %vm289, %v249, %v329
    %v370 = vsel %vm290, %v250, %v330
    %v371 = vsel %vm291, %v251, %v331
    %v372 = vsel %vm292, %v252, %v332
    %v373 = vsel %vm293, %v253, %v333
    %v374 = vsel %vm294, %v254, %v334
    %v375 = vsel %vm295, %v255, %v335
    %v376 = vsel %vm296, %v256, %v336
    %v377 = vsel %vm297, %v257, %v337
    %v378 = vsel %vm298, %v258, %v338
    %v379 = vsel %vm299, %v259, %v339
    %v380 = vsel %vm300, %v260, %v340
    %v381 = vsel %vm301, %v261, %v341
    %v382 = vsel %vm302, %v262, %v342
    %v383 = vsel %vm303, %v263, %v343
    %v384 = vsel %vm304, %v264, %v344
    %v385 = vsel %vm305, %v265, %v345
    %v386 = vsel %vm306, %v266, %v346
    %v387 = vsel %vm307, %v267, %v347
    %v388 = vsel %vm308, %v268, %v348
    %v389 = vsel %vm309, %v269, %v349
    %v390 = vsel %vm310, %v270, %v350
    %v391 = vsel %vm311, %v271, %v351
    %v392 = vsel %vm312, %v272, %v352
    %v393 = vsel %vm313, %v273, %v353
    %v394 = vsel %vm314, %v274, %v354
    %v395 = vsel %vm315, %v275, %v355
    %v396 = vsel %vm316, %v276, %v356
    %v397 = vsel %vm317, %v277, %v357
    %v398 = vsel %vm318, %v278, %v358
    %v399 = vsel %vm319, %v279, %v359
    %vm400 = vcmp.gt.f32.partialorder %v81, 0.0
    %vm401 = vcmp.gt.f32.partialorder %v82, 0.0
    %vm402 = vcmp.gt.f32.partialorder %v83, 0.0
    %vm403 = vcmp.gt.f32.partialorder %v84, 0.0
    %vm404 = vcmp.gt.f32.partialorder %v85, 0.0
    %vm405 = vcmp.gt.f32.partialorder %v86, 0.0
    %vm406 = vcmp.gt.f32.partialorder %v87, 0.0
    %vm407 = vcmp.gt.f32.partialorder %v88, 0.0
    %vm408 = vcmp.gt.f32.partialorder %v89, 0.0
    %vm409 = vcmp.gt.f32.partialorder %v90, 0.0
    %vm410 = vcmp.gt.f32.partialorder %v91, 0.0
    %vm411 = vcmp.gt.f32.partialorder %v92, 0.0
    %vm412 = vcmp.gt.f32.partialorder %v93, 0.0
    %vm413 = vcmp.gt.f32.partialorder %v94, 0.0
    %vm414 = vcmp.gt.f32.partialorder %v95, 0.0
    %vm415 = vcmp.gt.f32.partialorder %v96, 0.0
    %vm416 = vcmp.gt.f32.partialorder %v97, 0.0
    %vm417 = vcmp.gt.f32.partialorder %v98, 0.0
    %vm418 = vcmp.gt.f32.partialorder %v99, 0.0
    %vm419 = vcmp.gt.f32.partialorder %v100, 0.0
    %vm420 = vcmp.gt.f32.partialorder %v101, 0.0
    %vm421 = vcmp.gt.f32.partialorder %v102, 0.0
    %vm422 = vcmp.gt.f32.partialorder %v103, 0.0
    %vm423 = vcmp.gt.f32.partialorder %v104, 0.0
    %vm424 = vcmp.gt.f32.partialorder %v105, 0.0
    %vm425 = vcmp.gt.f32.partialorder %v106, 0.0
    %vm426 = vcmp.gt.f32.partialorder %v107, 0.0
    %vm427 = vcmp.gt.f32.partialorder %v108, 0.0
    %vm428 = vcmp.gt.f32.partialorder %v109, 0.0
    %vm429 = vcmp.gt.f32.partialorder %v110, 0.0
    %vm430 = vcmp.gt.f32.partialorder %v111, 0.0
    %vm431 = vcmp.gt.f32.partialorder %v112, 0.0
    %vm432 = vcmp.gt.f32.partialorder %v113, 0.0
    %vm433 = vcmp.gt.f32.partialorder %v114, 0.0
    %vm434 = vcmp.gt.f32.partialorder %v115, 0.0
    %vm435 = vcmp.gt.f32.partialorder %v116, 0.0
    %vm436 = vcmp.gt.f32.partialorder %v117, 0.0
    %vm437 = vcmp.gt.f32.partialorder %v118, 0.0
    %vm438 = vcmp.gt.f32.partialorder %v119, 0.0
    %vm439 = vcmp.gt.f32.partialorder %v120, 0.0
    %v440 = vsel %vm400, %v360, -9e+15
    %v441 = vsel %vm401, %v361, -9e+15
    %v442 = vsel %vm402, %v362, -9e+15
    %v443 = vsel %vm403, %v363, -9e+15
    %v444 = vsel %vm404, %v364, -9e+15
    %v445 = vsel %vm405, %v365, -9e+15
    %v446 = vsel %vm406, %v366, -9e+15
    %v447 = vsel %vm407, %v367, -9e+15
    %v448 = vsel %vm408, %v368, -9e+15
    %v449 = vsel %vm409, %v369, -9e+15
    %v450 = vsel %vm410, %v370, -9e+15
    %v451 = vsel %vm411, %v371, -9e+15
    %v452 = vsel %vm412, %v372, -9e+15
    %v453 = vsel %vm413, %v373, -9e+15
    %v454 = vsel %vm414, %v374, -9e+15
    %v455 = vsel %vm415, %v375, -9e+15
    %v456 = vsel %vm416, %v376, -9e+15
    %v457 = vsel %vm417, %v377, -9e+15
    %v458 = vsel %vm418, %v378, -9e+15
    %v459 = vsel %vm419, %v379, -9e+15
    %v460 = vsel %vm420, %v380, -9e+15
    %v461 = vsel %vm421, %v381, -9e+15
    %v462 = vsel %vm422, %v382, -9e+15
    %v463 = vsel %vm423, %v383, -9e+15
    %v464 = vsel %vm424, %v384, -9e+15
    %v465 = vsel %vm425, %v385, -9e+15
    %v466 = vsel %vm426, %v386, -9e+15
    %v467 = vsel %vm427, %v387, -9e+15
    %v468 = vsel %vm428, %v388, -9e+15
    %v469 = vsel %vm429, %v389, -9e+15
    %v470 = vsel %vm430, %v390, -9e+15
    %v471 = vsel %vm431, %v391, -9e+15
    %v472 = vsel %vm432, %v392, -9e+15
    %v473 = vsel %vm433, %v393, -9e+15
    %v474 = vsel %vm434, %v394, -9e+15
    %v475 = vsel %vm435, %v395, -9e+15
    %v476 = vsel %vm436, %v396, -9e+15
    %v477 = vsel %vm437, %v397, -9e+15
    %v478 = vsel %vm438, %v398, -9e+15
    %v479 = vsel %vm439, %v399, -9e+15
    %v480 = vmax.f32 %v440, %v444
    %v481 = vmax.f32 %v442, %v446
    %v482 = vmax.f32 %v480, %v448
    %v483 = vmax.f32 %v481, %v450
    %v484 = vmax.f32 %v482, %v452
    %v485 = vmax.f32 %v483, %v454
    %v486 = vmax.f32 %v484, %v456
    %v487 = vmax.f32 %v485, %v458
    %v488 = vmax.f32 %v486, %v460
    %v489 = vmax.f32 %v487, %v462
    %v490 = vmax.f32 %v488, %v464
    %v491 = vmax.f32 %v489, %v466
    %v492 = vmax.f32 %v490, %v468
    %v493 = vmax.f32 %v491, %v470
    %v494 = vmax.f32 %v492, %v472
    %v495 = vmax.f32 %v493, %v474
    %v496 = vmax.f32 %v494, %v476
    %vm497 = vcmask 1043456
    %v498 = vsel %vm497, %v478, -inf
    %v499 = vmax.f32 %v495, %v498
    %v500 = vmax.f32 %v496, %v499
    %v501 = vrot.slane %v500, 4
    %v502 = vmax.f32 %v500, %v501
    %v503 = vrot.slane %v502, 2
    %v504 = vmax.f32 %v502, %v503
    %v505 = vrot.slane %v504, 1
    %v506 = vmax.f32 %v504, %v505
    %v507 = vsel %vm145, %v441, -inf
    %v508 = vsel %vm145, %v443, -inf
    %v509 = vsel %vm145, %v445, -inf
    %v510 = vmax.f32 %v507, %v509
    %v511 = vsel %vm145, %v447, -inf
    %v512 = vmax.f32 %v508, %v511
    %v513 = vsel %vm145, %v449, -inf
    %v514 = vmax.f32 %v510, %v513
    %v515 = vsel %vm145, %v451, -inf
    %v516 = vmax.f32 %v512, %v515
    %v517 = vsel %vm145, %v453, -inf
    %v518 = vmax.f32 %v514, %v517
    %v519 = vsel %vm145, %v455, -inf
    %v520 = vmax.f32 %v516, %v519
    %v521 = vsel %vm145, %v457, -inf
    %v522 = vmax.f32 %v518, %v521
    %v523 = vsel %vm145, %v459, -inf
    %v524 = vmax.f32 %v520, %v523
    %v525 = vsel %vm145, %v461, -inf
    %v526 = vmax.f32 %v522, %v525
    %v527 = vsel %vm145, %v463, -inf
    %v528 = vmax.f32 %v524, %v527
    %v529 = vsel %vm145, %v465, -inf
    %v530 = vmax.f32 %v526, %v529
    %v531 = vsel %vm145, %v467, -inf
    %v532 = vmax.f32 %v528, %v531
    %v533 = vsel %vm145, %v469, -inf
    %v534 = vmax.f32 %v530, %v533
    %v535 = vsel %vm145, %v471, -inf
    %v536 = vmax.f32 %v532, %v535
    %v537 = vsel %vm145, %v473, -inf
    %v538 = vmax.f32 %v534, %v537
    %v539 = vsel %vm145, %v475, -inf
    %v540 = vmax.f32 %v536, %v539
    %v541 = vsel %vm145, %v477, -inf
    %v542 = vmax.f32 %v538, %v541
    %vm543 = vcmask 224256
    %v544 = vsel %vm543, %v479, -inf
    %v545 = vmax.f32 %v540, %v544
    %v546 = vmax.f32 %v542, %v545
    %v547 = vrot.slane %v546, 4
    %v548 = vmax.f32 %v546, %v547
    %v549 = vrot.slane %v548, 2
    %v550 = vmax.f32 %v548, %v549
    %v551 = vrot.slane %v550, 1
    %v552 = vmax.f32 %v550, %v551
    %v553 = vsub.f32 %v440, %v506
    %v554 = vsub.f32 %v441, %v552
    %v555 = vsub.f32 %v442, %v506
    %v556 = vsub.f32 %v443, %v552
    %v557 = vsub.f32 %v444, %v506
    %v558 = vsub.f32 %v445, %v552
    %v559 = vsub.f32 %v446, %v506
    %v560 = vsub.f32 %v447, %v552
    %v561 = vsub.f32 %v448, %v506
    %v562 = vsub.f32 %v449, %v552
    %v563 = vsub.f32 %v450, %v506
    %v564 = vsub.f32 %v451, %v552
    %v565 = vsub.f32 %v452, %v506
    %v566 = vsub.f32 %v453, %v552
    %v567 = vsub.f32 %v454, %v506
    %v568 = vsub.f32 %v455, %v552
    %v569 = vsub.f32 %v456, %v506
    %v570 = vsub.f32 %v457, %v552
    %v571 = vsub.f32 %v458, %v506
    %v572 = vsub.f32 %v459, %v552
    %v573 = vsub.f32 %v460, %v506
    %v574 = vsub.f32 %v461, %v552
    %v575 = vsub.f32 %v462, %v506
    %v576 = vsub.f32 %v463, %v552
    %v577 = vsub.f32 %v464, %v506
    %v578 = vsub.f32 %v465, %v552
    %v579 = vsub.f32 %v466, %v506
    %v580 = vsub.f32 %v467, %v552
    %v581 = vsub.f32 %v468, %v506
    %v582 = vsub.f32 %v469, %v552
    %v583 = vsub.f32 %v470, %v506
    %v584 = vsub.f32 %v471, %v552
    %v585 = vsub.f32 %v472, %v506
    %v586 = vsub.f32 %v473, %v552
    %v587 = vsub.f32 %v474, %v506
    %v588 = vsub.f32 %v475, %v552
    %v589 = vsub.f32 %v476, %v506
    %v590 = vsub.f32 %v477, %v552
    %v591 = vsub.f32 %v478, %v506
    %v592 = vsub.f32 %v479, %v552
    %v593 = vmul.f32 %v553, 1.442695
    %v594 = vpow.pop %v593
    %v595 = vmul.f32 %v554, 1.442695
    %v596 = vpow.pop %v595
    %v597 = vmul.f32 %v555, 1.442695
    %v598 = vpow.pop %v597
    %v599 = vmul.f32 %v556, 1.442695
    %v600 = vpow.pop %v599
    %v601 = vmul.f32 %v557, 1.442695
    %v602 = vpow.pop %v601
    %v603 = vmul.f32 %v558, 1.442695
    %v604 = vpow.pop %v603
    %v605 = vmul.f32 %v559, 1.442695
    %v606 = vpow.pop %v605
    %v607 = vmul.f32 %v560, 1.442695
    %v608 = vpow.pop %v607
    %v609 = vmul.f32 %v561, 1.442695
    %v610 = vpow.pop %v609
    %v611 = vmul.f32 %v562, 1.442695
    %v612 = vpow.pop %v611
    %v613 = vmul.f32 %v563, 1.442695
    %v614 = vpow.pop %v613
    %v615 = vmul.f32 %v564, 1.442695
    %v616 = vpow.pop %v615
    %v617 = vmul.f32 %v565, 1.442695
    %v618 = vpow.pop %v617
    %v619 = vmul.f32 %v566, 1.442695
    %v620 = vpow.pop %v619
    %v621 = vmul.f32 %v567, 1.442695
    %v622 = vpow.pop %v621
    %v623 = vmul.f32 %v568, 1.442695
    %v624 = vpow.pop %v623
    %v625 = vmul.f32 %v569, 1.442695
    %v626 = vpow.pop %v625
    %v627 = vmul.f32 %v570, 1.442695
    %v628 = vpow.pop %v627
    %v629 = vmul.f32 %v571, 1.442695
    %v630 = vpow.pop %v629
    %v631 = vmul.f32 %v572, 1.442695
    %v632 = vpow.pop %v631
    %v633 = vmul.f32 %v573, 1.442695
    %v634 = vpow.pop %v633
    %v635 = vmul.f32 %v574, 1.442695
    %v636 = vpow.pop %v635
    %v637 = vmul.f32 %v575, 1.442695
    %v638 = vpow.pop %v637
    %v639 = vmul.f32 %v576, 1.442695
    %v640 = vpow.pop %v639
    %v641 = vmul.f32 %v577, 1.442695
    %v642 = vpow.pop %v641
    %v643 = vmul.f32 %v578, 1.442695
    %v644 = vpow.pop %v643
    %v645 = vmul.f32 %v579, 1.442695
    %v646 = vpow.pop %v645
    %v647 = vmul.f32 %v580, 1.442695
    %v648 = vpow.pop %v647
    %v649 = vmul.f32 %v581, 1.442695
    %v650 = vpow.pop %v649
    %v651 = vmul.f32 %v582, 1.442695
    %v652 = vpow.pop %v651
    %v653 = vmul.f32 %v583, 1.442695
    %v654 = vpow.pop %v653
    %v655 = vmul.f32 %v584, 1.442695
    %v656 = vpow.pop %v655
    %v657 = vmul.f32 %v585, 1.442695
    %v658 = vpow.pop %v657
    %v659 = vmul.f32 %v586, 1.442695
    %v660 = vpow.pop %v659
    %v661 = vmul.f32 %v587, 1.442695
    %v662 = vpow.pop %v661
    %v663 = vmul.f32 %v588, 1.442695
    %v664 = vpow.pop %v663
    %v665 = vmul.f32 %v589, 1.442695
    %v666 = vpow.pop %v665
    %v667 = vmul.f32 %v590, 1.442695
    %v668 = vpow.pop %v667
    %v669 = vmul.f32 %v591, 1.442695
    %v670 = vpow.pop %v669
    %v671 = vmul.f32 %v592, 1.442695
    %v672 = vpow.pop %v671
    %v673 = vadd.f32 %v594, %v598
    %v674 = vadd.f32 %v673, %v602
    %v675 = vadd.f32 %v674, %v606
    %v676 = vadd.f32 %v675, %v610
    %v677 = vadd.f32 %v676, %v614
    %v678 = vadd.f32 %v677, %v618
    %v679 = vadd.f32 %v678, %v622
    %v680 = vadd.f32 %v679, %v626
    %v681 = vadd.f32 %v680, %v630
    %v682 = vadd.f32 %v681, %v634
    %v683 = vadd.f32 %v682, %v638
    %v684 = vadd.f32 %v683, %v642
    %v685 = vadd.f32 %v684, %v646
    %v686 = vadd.f32 %v685, %v650
    %v687 = vadd.f32 %v686, %v654
    %v688 = vadd.f32 %v687, %v658
    %v689 = vadd.f32 %v688, %v662
    %v690 = vadd.f32 %v689, %v666
    %v691 = vsel %vm497, %v670, 0.0
    %v692 = vadd.f32 %v690, %v691
    %v693 = vrot.slane %v692, 4
    %v694 = vadd.f32 %v692, %v693
    %v695 = vrot.slane %v694, 2
    %v696 = vadd.f32 %v694, %v695
    %v697 = vrot.slane %v696, 1
    %v698 = vadd.f32 %v696, %v697
    %v699 = vsel %vm145, %v596, 0.0
    %v700 = vsel %vm145, %v600, 0.0
    %v701 = vadd.f32 %v699, %v700
    %v702 = vsel %vm145, %v604, 0.0
    %v703 = vadd.f32 %v701, %v702
    %v704 = vsel %vm145, %v608, 0.0
    %v705 = vadd.f32 %v703, %v704
    %v706 = vsel %vm145, %v612, 0.0
    %v707 = vadd.f32 %v705, %v706
    %v708 = vsel %vm145, %v616, 0.0
    %v709 = vadd.f32 %v707, %v708
    %v710 = vsel %vm145, %v620, 0.0
    %v711 = vadd.f32 %v709, %v710
    %v712 = vsel %vm145, %v624, 0.0
    %v713 = vadd.f32 %v711, %v712
    %v714 = vsel %vm145, %v628, 0.0
    %v715 = vadd.f32 %v713, %v714
    %v716 = vsel %vm145, %v632, 0.0
    %v717 = vadd.f32 %v715, %v716
    %v718 = vsel %vm145, %v636, 0.0
    %v719 = vadd.f32 %v717, %v718
    %v720 = vsel %vm145, %v640, 0.0
    %v721 = vadd.f32 %v719, %v720
    %v722 = vsel %vm145, %v644, 0.0
    %v723 = vadd.f32 %v721, %v722
    %v724 = vsel %vm145, %v648, 0.0
    %v725 = vadd.f32 %v723, %v724
    %v726 = vsel %vm145, %v652, 0.0
    %v727 = vadd.f32 %v725, %v726
    %v728 = vsel %vm145, %v656, 0.0
    %v729 = vadd.f32 %v727, %v728
    %v730 = vsel %vm145, %v660, 0.0
    %v731 = vadd.f32 %v729, %v730
    %v732 = vsel %vm145, %v664, 0.0
    %v733 = vadd.f32 %v731, %v732
    %v734 = vsel %vm145, %v668, 0.0
    %v735 = vadd.f32 %v733, %v734
    %v736 = vsel %vm543, %v672, 0.0
    %v737 = vadd.f32 %v735, %v736
    %v738 = vrot.slane %v737, 4
    %v739 = vadd.f32 %v737, %v738
    %v740 = vrot.slane %v739, 2
    %v741 = vadd.f32 %v739, %v740
    %v742 = vrot.slane %v741, 1
    %v743 = vadd.f32 %v741, %v742
    %v744 = vrcp.pop %v698
    %v745 = vrcp.pop %v743
    %v746 = vmul.f32 %v594, %v744
    %v747 = vmul.f32 %v596, %v745
    %v748 = vmul.f32 %v598, %v744
    %v749 = vmul.f32 %v600, %v745
    %v750 = vmul.f32 %v602, %v744
    %v751 = vmul.f32 %v604, %v745
    %v752 = vmul.f32 %v606, %v744
    %v753 = vmul.f32 %v608, %v745
    %v754 = vmul.f32 %v610, %v744
    %v755 = vmul.f32 %v612, %v745
    %v756 = vmul.f32 %v614, %v744
    %v757 = vmul.f32 %v616, %v745
    %v758 = vmul.f32 %v618, %v744
    %v759 = vmul.f32 %v620, %v745
    %v760 = vmul.f32 %v622, %v744
    %v761 = vmul.f32 %v624, %v745
    %v762 = vmul.f32 %v626, %v744
    %v763 = vmul.f32 %v628, %v745
    %v764 = vmul.f32 %v630, %v744
    %v765 = vmul.f32 %v632, %v745
    %v766 = vmul.f32 %v634, %v744
    %v767 = vmul.f32 %v636, %v745
    %v768 = vmul.f32 %v638, %v744
    %v769 = vmul.f32 %v640, %v745
    %v770 = vmul.f32 %v642, %v744
    %v771 = vmul.f32 %v644, %v745
    %v772 = vmul.f32 %v646, %v744
    %v773 = vmul.f32 %v648, %v745
    %v774 = vmul.f32 %v650, %v744
    %v775 = vmul.f32 %v652, %v745
    %v776 = vmul.f32 %v654, %v744
    %v777 = vmul.f32 %v656, %v745
    %v778 = vmul.f32 %v658, %v744
    %v779 = vmul.f32 %v660, %v745
    %v780 = vmul.f32 %v662, %v744
    %v781 = vmul.f32 %v664, %v745
    %v782 = vmul.f32 %v666, %v744
    %v783 = vmul.f32 %v668, %v745
    %v784 = vmul.f32 %v670, %v744
    %v785 = vmul.f32 %v672, %v745
    %v786 = vld [vmem:[%s7] sm:$0xff]
    %v787 = vld [vmem:[%s7 + $0x8] sm:$0xff]
    %v788 = vld [vmem:[%s8] sm:$0x1]
    %790 = vset.pattern.permute.xlu0 0
    %791 = vperm.xlu0 %790, %v786
    %v792 = vpop.permute.xlu0 %791
    %795 = vset.pattern.permute.xlu0 0
    %796 = vperm.xlu0 %795, %v787
    %v797 = vpop.permute.xlu0 %796
    %v799 = vmul.f32 %v77, %v792
    %v800 = vmul.f32 %v78, %v792
    %v801 = vmul.f32 %v79, %v797
    %v802 = vmul.f32 %v80, %v797
    %v803 = vadd.f32 %v799, %v801
    %v804 = vrot.slane %v803, 4
    %v805 = vadd.f32 %v803, %v804
    %v806 = vrot.slane %v805, 2
    %v807 = vadd.f32 %v805, %v806
    %v808 = vrot.slane %v807, 1
    %v809 = vadd.f32 %v807, %v808
    %v810 = vsel %vm145, %v800, 0.0
    %v811 = vsel %vm145, %v802, 0.0
    %v812 = vadd.f32 %v810, %v811
    %v813 = vrot.slane %v812, 4
    %v814 = vadd.f32 %v812, %v813
    %v815 = vrot.slane %v814, 2
    %v816 = vadd.f32 %v814, %v815
    %v817 = vrot.slane %v816, 1
    %v818 = vadd.f32 %v816, %v817
    %v820 = vperm.slane %v788, 0
    %v822 = vmul.f32 %v57, %v820
    %v823 = vmul.f32 %v58, %v820
    %v824 = vmul.f32 %v59, %v820
    %v825 = vmul.f32 %v60, %v820
    %v826 = vmul.f32 %v61, %v820
    %v827 = vmul.f32 %v62, %v820
    %v828 = vmul.f32 %v63, %v820
    %v829 = vmul.f32 %v64, %v820
    %v830 = vmul.f32 %v65, %v820
    %v831 = vmul.f32 %v66, %v820
    %v832 = vmul.f32 %v67, %v820
    %v833 = vmul.f32 %v68, %v820
    %v834 = vmul.f32 %v69, %v820
    %v835 = vmul.f32 %v70, %v820
    %v836 = vmul.f32 %v71, %v820
    %v837 = vmul.f32 %v72, %v820
    %v838 = vmul.f32 %v73, %v820
    %v839 = vmul.f32 %v74, %v820
    %v840 = vmul.f32 %v75, %v820
    %v841 = vmul.f32 %v76, %v820
    %v842 = vsel %vm178, %v822, 0.0
    %843 = vadd.xlane.f32.xlu0 %v842
    %v844 = vpop.xlane.xlu0 %843
    %v845 = vsel %vm178, %v823, 0.0
    %846 = vadd.xlane.f32.xlu0 %v845
    %v847 = vpop.xlane.xlu0 %846
    %v848 = vsel %vm178, %v824, 0.0
    %849 = vadd.xlane.f32.xlu0 %v848
    %v850 = vpop.xlane.xlu0 %849
    %v851 = vsel %vm178, %v825, 0.0
    %852 = vadd.xlane.f32.xlu0 %v851
    %v853 = vpop.xlane.xlu0 %852
    %v854 = vsel %vm178, %v826, 0.0
    %855 = vadd.xlane.f32.xlu0 %v854
    %v856 = vpop.xlane.xlu0 %855
    %v857 = vsel %vm178, %v827, 0.0
    %858 = vadd.xlane.f32.xlu0 %v857
    %v859 = vpop.xlane.xlu0 %858
    %v860 = vsel %vm178, %v828, 0.0
    %861 = vadd.xlane.f32.xlu0 %v860
    %v862 = vpop.xlane.xlu0 %861
    %v863 = vsel %vm178, %v829, 0.0
    %864 = vadd.xlane.f32.xlu0 %v863
    %v865 = vpop.xlane.xlu0 %864
    %v866 = vsel %vm178, %v830, 0.0
    %867 = vadd.xlane.f32.xlu0 %v866
    %v868 = vpop.xlane.xlu0 %867
    %v869 = vsel %vm178, %v831, 0.0
    %870 = vadd.xlane.f32.xlu0 %v869
    %v871 = vpop.xlane.xlu0 %870
    %v872 = vsel %vm178, %v832, 0.0
    %873 = vadd.xlane.f32.xlu0 %v872
    %v874 = vpop.xlane.xlu0 %873
    %v875 = vsel %vm178, %v833, 0.0
    %876 = vadd.xlane.f32.xlu0 %v875
    %v877 = vpop.xlane.xlu0 %876
    %v878 = vsel %vm178, %v834, 0.0
    %879 = vadd.xlane.f32.xlu0 %v878
    %v880 = vpop.xlane.xlu0 %879
    %v881 = vsel %vm178, %v835, 0.0
    %882 = vadd.xlane.f32.xlu0 %v881
    %v883 = vpop.xlane.xlu0 %882
    %v884 = vsel %vm178, %v836, 0.0
    %885 = vadd.xlane.f32.xlu0 %v884
    %v886 = vpop.xlane.xlu0 %885
    %v887 = vsel %vm178, %v837, 0.0
    %888 = vadd.xlane.f32.xlu0 %v887
    %v889 = vpop.xlane.xlu0 %888
    %v890 = vsel %vm178, %v838, 0.0
    %891 = vadd.xlane.f32.xlu0 %v890
    %v892 = vpop.xlane.xlu0 %891
    %v893 = vsel %vm178, %v839, 0.0
    %894 = vadd.xlane.f32.xlu0 %v893
    %v895 = vpop.xlane.xlu0 %894
    %v896 = vsel %vm178, %v840, 0.0
    %897 = vadd.xlane.f32.xlu0 %v896
    %v898 = vpop.xlane.xlu0 %897
    %v899 = vsel %vm236, %v841, 0.0
    %900 = vadd.xlane.f32.xlu0 %v899
    %v901 = vpop.xlane.xlu0 %900
    %v902 = vadd.f32 %v844, %v809
    %v903 = vadd.f32 %v844, %v818
    %v904 = vadd.f32 %v847, %v809
    %v905 = vadd.f32 %v847, %v818
    %v906 = vadd.f32 %v850, %v809
    %v907 = vadd.f32 %v850, %v818
    %v908 = vadd.f32 %v853, %v809
    %v909 = vadd.f32 %v853, %v818
    %v910 = vadd.f32 %v856, %v809
    %v911 = vadd.f32 %v856, %v818
    %v912 = vadd.f32 %v859, %v809
    %v913 = vadd.f32 %v859, %v818
    %v914 = vadd.f32 %v862, %v809
    %v915 = vadd.f32 %v862, %v818
    %v916 = vadd.f32 %v865, %v809
    %v917 = vadd.f32 %v865, %v818
    %v918 = vadd.f32 %v868, %v809
    %v919 = vadd.f32 %v868, %v818
    %v920 = vadd.f32 %v871, %v809
    %v921 = vadd.f32 %v871, %v818
    %v922 = vadd.f32 %v874, %v809
    %v923 = vadd.f32 %v874, %v818
    %v924 = vadd.f32 %v877, %v809
    %v925 = vadd.f32 %v877, %v818
    %v926 = vadd.f32 %v880, %v809
    %v927 = vadd.f32 %v880, %v818
    %v928 = vadd.f32 %v883, %v809
    %v929 = vadd.f32 %v883, %v818
    %v930 = vadd.f32 %v886, %v809
    %v931 = vadd.f32 %v886, %v818
    %v932 = vadd.f32 %v889, %v809
    %v933 = vadd.f32 %v889, %v818
    %v934 = vadd.f32 %v892, %v809
    %v935 = vadd.f32 %v892, %v818
    %v936 = vadd.f32 %v895, %v809
    %v937 = vadd.f32 %v895, %v818
    %v938 = vadd.f32 %v898, %v809
    %v939 = vadd.f32 %v898, %v818
    %v940 = vadd.f32 %v901, %v809
    %v941 = vadd.f32 %v901, %v818
    %vm942 = vcmp.gt.f32.partialorder %v902, 0.0
    %vm943 = vcmp.gt.f32.partialorder %v903, 0.0
    %vm944 = vcmp.gt.f32.partialorder %v904, 0.0
    %vm945 = vcmp.gt.f32.partialorder %v905, 0.0
    %vm946 = vcmp.gt.f32.partialorder %v906, 0.0
    %vm947 = vcmp.gt.f32.partialorder %v907, 0.0
    %vm948 = vcmp.gt.f32.partialorder %v908, 0.0
    %vm949 = vcmp.gt.f32.partialorder %v909, 0.0
    %vm950 = vcmp.gt.f32.partialorder %v910, 0.0
    %vm951 = vcmp.gt.f32.partialorder %v911, 0.0
    %vm952 = vcmp.gt.f32.partialorder %v912, 0.0
    %vm953 = vcmp.gt.f32.partialorder %v913, 0.0
    %vm954 = vcmp.gt.f32.partialorder %v914, 0.0
    %vm955 = vcmp.gt.f32.partialorder %v915, 0.0
    %vm956 = vcmp.gt.f32.partialorder %v916, 0.0
    %vm957 = vcmp.gt.f32.partialorder %v917, 0.0
    %vm958 = vcmp.gt.f32.partialorder %v918, 0.0
    %vm959 = vcmp.gt.f32.partialorder %v919, 0.0
    %vm960 = vcmp.gt.f32.partialorder %v920, 0.0
    %vm961 = vcmp.gt.f32.partialorder %v921, 0.0
    %vm962 = vcmp.gt.f32.partialorder %v922, 0.0
    %vm963 = vcmp.gt.f32.partialorder %v923, 0.0
    %vm964 = vcmp.gt.f32.partialorder %v924, 0.0
    %vm965 = vcmp.gt.f32.partialorder %v925, 0.0
    %vm966 = vcmp.gt.f32.partialorder %v926, 0.0
    %vm967 = vcmp.gt.f32.partialorder %v927, 0.0
    %vm968 = vcmp.gt.f32.partialorder %v928, 0.0
    %vm969 = vcmp.gt.f32.partialorder %v929, 0.0
    %vm970 = vcmp.gt.f32.partialorder %v930, 0.0
    %vm971 = vcmp.gt.f32.partialorder %v931, 0.0
    %vm972 = vcmp.gt.f32.partialorder %v932, 0.0
    %vm973 = vcmp.gt.f32.partialorder %v933, 0.0
    %vm974 = vcmp.gt.f32.partialorder %v934, 0.0
    %vm975 = vcmp.gt.f32.partialorder %v935, 0.0
    %vm976 = vcmp.gt.f32.partialorder %v936, 0.0
    %vm977 = vcmp.gt.f32.partialorder %v937, 0.0
    %vm978 = vcmp.gt.f32.partialorder %v938, 0.0
    %vm979 = vcmp.gt.f32.partialorder %v939, 0.0
    %vm980 = vcmp.gt.f32.partialorder %v940, 0.0
    %vm981 = vcmp.gt.f32.partialorder %v941, 0.0
    %v982 = vmul.f32 %v902, 0.2
    %v983 = vmul.f32 %v903, 0.2
    %v984 = vmul.f32 %v904, 0.2
    %v985 = vmul.f32 %v905, 0.2
    %v986 = vmul.f32 %v906, 0.2
    %v987 = vmul.f32 %v907, 0.2
    %v988 = vmul.f32 %v908, 0.2
    %v989 = vmul.f32 %v909, 0.2
    %v990 = vmul.f32 %v910, 0.2
    %v991 = vmul.f32 %v911, 0.2
    %v992 = vmul.f32 %v912, 0.2
    %v993 = vmul.f32 %v913, 0.2
    %v994 = vmul.f32 %v914, 0.2
    %v995 = vmul.f32 %v915, 0.2
    %v996 = vmul.f32 %v916, 0.2
    %v997 = vmul.f32 %v917, 0.2
    %v998 = vmul.f32 %v918, 0.2
    %v999 = vmul.f32 %v919, 0.2
    %v1000 = vmul.f32 %v920, 0.2
    %v1001 = vmul.f32 %v921, 0.2
    %v1002 = vmul.f32 %v922, 0.2
    %v1003 = vmul.f32 %v923, 0.2
    %v1004 = vmul.f32 %v924, 0.2
    %v1005 = vmul.f32 %v925, 0.2
    %v1006 = vmul.f32 %v926, 0.2
    %v1007 = vmul.f32 %v927, 0.2
    %v1008 = vmul.f32 %v928, 0.2
    %v1009 = vmul.f32 %v929, 0.2
    %v1010 = vmul.f32 %v930, 0.2
    %v1011 = vmul.f32 %v931, 0.2
    %v1012 = vmul.f32 %v932, 0.2
    %v1013 = vmul.f32 %v933, 0.2
    %v1014 = vmul.f32 %v934, 0.2
    %v1015 = vmul.f32 %v935, 0.2
    %v1016 = vmul.f32 %v936, 0.2
    %v1017 = vmul.f32 %v937, 0.2
    %v1018 = vmul.f32 %v938, 0.2
    %v1019 = vmul.f32 %v939, 0.2
    %v1020 = vmul.f32 %v940, 0.2
    %v1021 = vmul.f32 %v941, 0.2
    %v1022 = vsel %vm942, %v902, %v982
    %v1023 = vsel %vm943, %v903, %v983
    %v1024 = vsel %vm944, %v904, %v984
    %v1025 = vsel %vm945, %v905, %v985
    %v1026 = vsel %vm946, %v906, %v986
    %v1027 = vsel %vm947, %v907, %v987
    %v1028 = vsel %vm948, %v908, %v988
    %v1029 = vsel %vm949, %v909, %v989
    %v1030 = vsel %vm950, %v910, %v990
    %v1031 = vsel %vm951, %v911, %v991
    %v1032 = vsel %vm952, %v912, %v992
    %v1033 = vsel %vm953, %v913, %v993
    %v1034 = vsel %vm954, %v914, %v994
    %v1035 = vsel %vm955, %v915, %v995
    %v1036 = vsel %vm956, %v916, %v996
    %v1037 = vsel %vm957, %v917, %v997
    %v1038 = vsel %vm958, %v918, %v998
    %v1039 = vsel %vm959, %v919, %v999
    %v1040 = vsel %vm960, %v920, %v1000
    %v1041 = vsel %vm961, %v921, %v1001
    %v1042 = vsel %vm962, %v922, %v1002
    %v1043 = vsel %vm963, %v923, %v1003
    %v1044 = vsel %vm964, %v924, %v1004
    %v1045 = vsel %vm965, %v925, %v1005
    %v1046 = vsel %vm966, %v926, %v1006
    %v1047 = vsel %vm967, %v927, %v1007
    %v1048 = vsel %vm968, %v928, %v1008
    %v1049 = vsel %vm969, %v929, %v1009
    %v1050 = vsel %vm970, %v930, %v1010
    %v1051 = vsel %vm971, %v931, %v1011
    %v1052 = vsel %vm972, %v932, %v1012
    %v1053 = vsel %vm973, %v933, %v1013
    %v1054 = vsel %vm974, %v934, %v1014
    %v1055 = vsel %vm975, %v935, %v1015
    %v1056 = vsel %vm976, %v936, %v1016
    %v1057 = vsel %vm977, %v937, %v1017
    %v1058 = vsel %vm978, %v938, %v1018
    %v1059 = vsel %vm979, %v939, %v1019
    %v1060 = vsel %vm980, %v940, %v1020
    %v1061 = vsel %vm981, %v941, %v1021
    %v1062 = vsel %vm400, %v1022, -9e+15
    %v1063 = vsel %vm401, %v1023, -9e+15
    %v1064 = vsel %vm402, %v1024, -9e+15
    %v1065 = vsel %vm403, %v1025, -9e+15
    %v1066 = vsel %vm404, %v1026, -9e+15
    %v1067 = vsel %vm405, %v1027, -9e+15
    %v1068 = vsel %vm406, %v1028, -9e+15
    %v1069 = vsel %vm407, %v1029, -9e+15
    %v1070 = vsel %vm408, %v1030, -9e+15
    %v1071 = vsel %vm409, %v1031, -9e+15
    %v1072 = vsel %vm410, %v1032, -9e+15
    %v1073 = vsel %vm411, %v1033, -9e+15
    %v1074 = vsel %vm412, %v1034, -9e+15
    %v1075 = vsel %vm413, %v1035, -9e+15
    %v1076 = vsel %vm414, %v1036, -9e+15
    %v1077 = vsel %vm415, %v1037, -9e+15
    %v1078 = vsel %vm416, %v1038, -9e+15
    %v1079 = vsel %vm417, %v1039, -9e+15
    %v1080 = vsel %vm418, %v1040, -9e+15
    %v1081 = vsel %vm419, %v1041, -9e+15
    %v1082 = vsel %vm420, %v1042, -9e+15
    %v1083 = vsel %vm421, %v1043, -9e+15
    %v1084 = vsel %vm422, %v1044, -9e+15
    %v1085 = vsel %vm423, %v1045, -9e+15
    %v1086 = vsel %vm424, %v1046, -9e+15
    %v1087 = vsel %vm425, %v1047, -9e+15
    %v1088 = vsel %vm426, %v1048, -9e+15
    %v1089 = vsel %vm427, %v1049, -9e+15
    %v1090 = vsel %vm428, %v1050, -9e+15
    %v1091 = vsel %vm429, %v1051, -9e+15
    %v1092 = vsel %vm430, %v1052, -9e+15
    %v1093 = vsel %vm431, %v1053, -9e+15
    %v1094 = vsel %vm432, %v1054, -9e+15
    %v1095 = vsel %vm433, %v1055, -9e+15
    %v1096 = vsel %vm434, %v1056, -9e+15
    %v1097 = vsel %vm435, %v1057, -9e+15
    %v1098 = vsel %vm436, %v1058, -9e+15
    %v1099 = vsel %vm437, %v1059, -9e+15
    %v1100 = vsel %vm438, %v1060, -9e+15
    %v1101 = vsel %vm439, %v1061, -9e+15
    %v1102 = vmax.f32 %v1062, %v1066
    %v1103 = vmax.f32 %v1064, %v1068
    %v1104 = vmax.f32 %v1102, %v1070
    %v1105 = vmax.f32 %v1103, %v1072
    %v1106 = vmax.f32 %v1104, %v1074
    %v1107 = vmax.f32 %v1105, %v1076
    %v1108 = vmax.f32 %v1106, %v1078
    %v1109 = vmax.f32 %v1107, %v1080
    %v1110 = vmax.f32 %v1108, %v1082
    %v1111 = vmax.f32 %v1109, %v1084
    %v1112 = vmax.f32 %v1110, %v1086
    %v1113 = vmax.f32 %v1111, %v1088
    %v1114 = vmax.f32 %v1112, %v1090
    %v1115 = vmax.f32 %v1113, %v1092
    %v1116 = vmax.f32 %v1114, %v1094
    %v1117 = vmax.f32 %v1115, %v1096
    %v1118 = vmax.f32 %v1116, %v1098
    %v1119 = vsel %vm497, %v1100, -inf
    %v1120 = vmax.f32 %v1117, %v1119
    %v1121 = vmax.f32 %v1118, %v1120
    %v1122 = vrot.slane %v1121, 4
    %v1123 = vmax.f32 %v1121, %v1122
    %v1124 = vrot.slane %v1123, 2
    %v1125 = vmax.f32 %v1123, %v1124
    %v1126 = vrot.slane %v1125, 1
    %v1127 = vmax.f32 %v1125, %v1126
    %v1128 = vsel %vm145, %v1063, -inf
    %v1129 = vsel %vm145, %v1065, -inf
    %v1130 = vsel %vm145, %v1067, -inf
    %v1131 = vmax.f32 %v1128, %v1130
    %v1132 = vsel %vm145, %v1069, -inf
    %v1133 = vmax.f32 %v1129, %v1132
    %v1134 = vsel %vm145, %v1071, -inf
    %v1135 = vmax.f32 %v1131, %v1134
    %v1136 = vsel %vm145, %v1073, -inf
    %v1137 = vmax.f32 %v1133, %v1136
    %v1138 = vsel %vm145, %v1075, -inf
    %v1139 = vmax.f32 %v1135, %v1138
    %v1140 = vsel %vm145, %v1077, -inf
    %v1141 = vmax.f32 %v1137, %v1140
    %v1142 = vsel %vm145, %v1079, -inf
    %v1143 = vmax.f32 %v1139, %v1142
    %v1144 = vsel %vm145, %v1081, -inf
    %v1145 = vmax.f32 %v1141, %v1144
    %v1146 = vsel %vm145, %v1083, -inf
    %v1147 = vmax.f32 %v1143, %v1146
    %v1148 = vsel %vm145, %v1085, -inf
    %v1149 = vmax.f32 %v1145, %v1148
    %v1150 = vsel %vm145, %v1087, -inf
    %v1151 = vmax.f32 %v1147, %v1150
    %v1152 = vsel %vm145, %v1089, -inf
    %v1153 = vmax.f32 %v1149, %v1152
    %v1154 = vsel %vm145, %v1091, -inf
    %v1155 = vmax.f32 %v1151, %v1154
    %v1156 = vsel %vm145, %v1093, -inf
    %v1157 = vmax.f32 %v1153, %v1156
    %v1158 = vsel %vm145, %v1095, -inf
    %v1159 = vmax.f32 %v1155, %v1158
    %v1160 = vsel %vm145, %v1097, -inf
    %v1161 = vmax.f32 %v1157, %v1160
    %v1162 = vsel %vm145, %v1099, -inf
    %v1163 = vmax.f32 %v1159, %v1162
    %v1164 = vsel %vm543, %v1101, -inf
    %v1165 = vmax.f32 %v1161, %v1164
    %v1166 = vmax.f32 %v1163, %v1165
    %v1167 = vrot.slane %v1166, 4
    %v1168 = vmax.f32 %v1166, %v1167
    %v1169 = vrot.slane %v1168, 2
    %v1170 = vmax.f32 %v1168, %v1169
    %v1171 = vrot.slane %v1170, 1
    %v1172 = vmax.f32 %v1170, %v1171
    %v1173 = vsub.f32 %v1062, %v1127
    %v1174 = vsub.f32 %v1063, %v1172
    %v1175 = vsub.f32 %v1064, %v1127
    %v1176 = vsub.f32 %v1065, %v1172
    %v1177 = vsub.f32 %v1066, %v1127
    %v1178 = vsub.f32 %v1067, %v1172
    %v1179 = vsub.f32 %v1068, %v1127
    %v1180 = vsub.f32 %v1069, %v1172
    %v1181 = vsub.f32 %v1070, %v1127
    %v1182 = vsub.f32 %v1071, %v1172
    %v1183 = vsub.f32 %v1072, %v1127
    %v1184 = vsub.f32 %v1073, %v1172
    %v1185 = vsub.f32 %v1074, %v1127
    %v1186 = vsub.f32 %v1075, %v1172
    %v1187 = vsub.f32 %v1076, %v1127
    %v1188 = vsub.f32 %v1077, %v1172
    %v1189 = vsub.f32 %v1078, %v1127
    %v1190 = vsub.f32 %v1079, %v1172
    %v1191 = vsub.f32 %v1080, %v1127
    %v1192 = vsub.f32 %v1081, %v1172
    %v1193 = vsub.f32 %v1082, %v1127
    %v1194 = vsub.f32 %v1083, %v1172
    %v1195 = vsub.f32 %v1084, %v1127
    %v1196 = vsub.f32 %v1085, %v1172
    %v1197 = vsub.f32 %v1086, %v1127
    %v1198 = vsub.f32 %v1087, %v1172
    %v1199 = vsub.f32 %v1088, %v1127
    %v1200 = vsub.f32 %v1089, %v1172
    %v1201 = vsub.f32 %v1090, %v1127
    %v1202 = vsub.f32 %v1091, %v1172
    %v1203 = vsub.f32 %v1092, %v1127
    %v1204 = vsub.f32 %v1093, %v1172
    %v1205 = vsub.f32 %v1094, %v1127
    %v1206 = vsub.f32 %v1095, %v1172
    %v1207 = vsub.f32 %v1096, %v1127
    %v1208 = vsub.f32 %v1097, %v1172
    %v1209 = vsub.f32 %v1098, %v1127
    %v1210 = vsub.f32 %v1099, %v1172
    %v1211 = vsub.f32 %v1100, %v1127
    %v1212 = vsub.f32 %v1101, %v1172
    %v1213 = vmul.f32 %v1173, 1.442695
    %v1214 = vpow.pop %v1213
    %v1215 = vmul.f32 %v1174, 1.442695
    %v1216 = vpow.pop %v1215
    %v1217 = vmul.f32 %v1175, 1.442695
    %v1218 = vpow.pop %v1217
    %v1219 = vmul.f32 %v1176, 1.442695
    %v1220 = vpow.pop %v1219
    %v1221 = vmul.f32 %v1177, 1.442695
    %v1222 = vpow.pop %v1221
    %v1223 = vmul.f32 %v1178, 1.442695
    %v1224 = vpow.pop %v1223
    %v1225 = vmul.f32 %v1179, 1.442695
    %v1226 = vpow.pop %v1225
    %v1227 = vmul.f32 %v1180, 1.442695
    %v1228 = vpow.pop %v1227
    %v1229 = vmul.f32 %v1181, 1.442695
    %v1230 = vpow.pop %v1229
    %v1231 = vmul.f32 %v1182, 1.442695
    %v1232 = vpow.pop %v1231
    %v1233 = vmul.f32 %v1183, 1.442695
    %v1234 = vpow.pop %v1233
    %v1235 = vmul.f32 %v1184, 1.442695
    %v1236 = vpow.pop %v1235
    %v1237 = vmul.f32 %v1185, 1.442695
    %v1238 = vpow.pop %v1237
    %v1239 = vmul.f32 %v1186, 1.442695
    %v1240 = vpow.pop %v1239
    %v1241 = vmul.f32 %v1187, 1.442695
    %v1242 = vpow.pop %v1241
    %v1243 = vmul.f32 %v1188, 1.442695
    %v1244 = vpow.pop %v1243
    %v1245 = vmul.f32 %v1189, 1.442695
    %v1246 = vpow.pop %v1245
    %v1247 = vmul.f32 %v1190, 1.442695
    %v1248 = vpow.pop %v1247
    %v1249 = vmul.f32 %v1191, 1.442695
    %v1250 = vpow.pop %v1249
    %v1251 = vmul.f32 %v1192, 1.442695
    %v1252 = vpow.pop %v1251
    %v1253 = vmul.f32 %v1193, 1.442695
    %v1254 = vpow.pop %v1253
    %v1255 = vmul.f32 %v1194, 1.442695
    %v1256 = vpow.pop %v1255
    %v1257 = vmul.f32 %v1195, 1.442695
    %v1258 = vpow.pop %v1257
    %v1259 = vmul.f32 %v1196, 1.442695
    %v1260 = vpow.pop %v1259
    %v1261 = vmul.f32 %v1197, 1.442695
    %v1262 = vpow.pop %v1261
    %v1263 = vmul.f32 %v1198, 1.442695
    %v1264 = vpow.pop %v1263
    %v1265 = vmul.f32 %v1199, 1.442695
    %v1266 = vpow.pop %v1265
    %v1267 = vmul.f32 %v1200, 1.442695
    %v1268 = vpow.pop %v1267
    %v1269 = vmul.f32 %v1201, 1.442695
    %v1270 = vpow.pop %v1269
    %v1271 = vmul.f32 %v1202, 1.442695
    %v1272 = vpow.pop %v1271
    %v1273 = vmul.f32 %v1203, 1.442695
    %v1274 = vpow.pop %v1273
    %v1275 = vmul.f32 %v1204, 1.442695
    %v1276 = vpow.pop %v1275
    %v1277 = vmul.f32 %v1205, 1.442695
    %v1278 = vpow.pop %v1277
    %v1279 = vmul.f32 %v1206, 1.442695
    %v1280 = vpow.pop %v1279
    %v1281 = vmul.f32 %v1207, 1.442695
    %v1282 = vpow.pop %v1281
    %v1283 = vmul.f32 %v1208, 1.442695
    %v1284 = vpow.pop %v1283
    %v1285 = vmul.f32 %v1209, 1.442695
    %v1286 = vpow.pop %v1285
    %v1287 = vmul.f32 %v1210, 1.442695
    %v1288 = vpow.pop %v1287
    %v1289 = vmul.f32 %v1211, 1.442695
    %v1290 = vpow.pop %v1289
    %v1291 = vmul.f32 %v1212, 1.442695
    %v1292 = vpow.pop %v1291
    %v1293 = vadd.f32 %v1214, %v1218
    %v1294 = vadd.f32 %v1293, %v1222
    %v1295 = vadd.f32 %v1294, %v1226
    %v1296 = vadd.f32 %v1295, %v1230
    %v1297 = vadd.f32 %v1296, %v1234
    %v1298 = vadd.f32 %v1297, %v1238
    %v1299 = vadd.f32 %v1298, %v1242
    %v1300 = vadd.f32 %v1299, %v1246
    %v1301 = vadd.f32 %v1300, %v1250
    %v1302 = vadd.f32 %v1301, %v1254
    %v1303 = vadd.f32 %v1302, %v1258
    %v1304 = vadd.f32 %v1303, %v1262
    %v1305 = vadd.f32 %v1304, %v1266
    %v1306 = vadd.f32 %v1305, %v1270
    %v1307 = vadd.f32 %v1306, %v1274
    %v1308 = vadd.f32 %v1307, %v1278
    %v1309 = vadd.f32 %v1308, %v1282
    %v1310 = vadd.f32 %v1309, %v1286
    %v1311 = vsel %vm497, %v1290, 0.0
    %v1312 = vadd.f32 %v1310, %v1311
    %v1313 = vrot.slane %v1312, 4
    %v1314 = vadd.f32 %v1312, %v1313
    %v1315 = vrot.slane %v1314, 2
    %v1316 = vadd.f32 %v1314, %v1315
    %v1317 = vrot.slane %v1316, 1
    %v1318 = vadd.f32 %v1316, %v1317
    %v1319 = vsel %vm145, %v1216, 0.0
    %v1320 = vsel %vm145, %v1220, 0.0
    %v1321 = vadd.f32 %v1319, %v1320
    %v1322 = vsel %vm145, %v1224, 0.0
    %v1323 = vadd.f32 %v1321, %v1322
    %v1324 = vsel %vm145, %v1228, 0.0
    %v1325 = vadd.f32 %v1323, %v1324
    %v1326 = vsel %vm145, %v1232, 0.0
    %v1327 = vadd.f32 %v1325, %v1326
    %v1328 = vsel %vm145, %v1236, 0.0
    %v1329 = vadd.f32 %v1327, %v1328
    %v1330 = vsel %vm145, %v1240, 0.0
    %v1331 = vadd.f32 %v1329, %v1330
    %v1332 = vsel %vm145, %v1244, 0.0
    %v1333 = vadd.f32 %v1331, %v1332
    %v1334 = vsel %vm145, %v1248, 0.0
    %v1335 = vadd.f32 %v1333, %v1334
    %v1336 = vsel %vm145, %v1252, 0.0
    %v1337 = vadd.f32 %v1335, %v1336
    %v1338 = vsel %vm145, %v1256, 0.0
    %v1339 = vadd.f32 %v1337, %v1338
    %v1340 = vsel %vm145, %v1260, 0.0
    %v1341 = vadd.f32 %v1339, %v1340
    %v1342 = vsel %vm145, %v1264, 0.0
    %v1343 = vadd.f32 %v1341, %v1342
    %v1344 = vsel %vm145, %v1268, 0.0
    %v1345 = vadd.f32 %v1343, %v1344
    %v1346 = vsel %vm145, %v1272, 0.0
    %v1347 = vadd.f32 %v1345, %v1346
    %v1348 = vsel %vm145, %v1276, 0.0
    %v1349 = vadd.f32 %v1347, %v1348
    %v1350 = vsel %vm145, %v1280, 0.0
    %v1351 = vadd.f32 %v1349, %v1350
    %v1352 = vsel %vm145, %v1284, 0.0
    %v1353 = vadd.f32 %v1351, %v1352
    %v1354 = vsel %vm145, %v1288, 0.0
    %v1355 = vadd.f32 %v1353, %v1354
    %v1356 = vsel %vm543, %v1292, 0.0
    %v1357 = vadd.f32 %v1355, %v1356
    %v1358 = vrot.slane %v1357, 4
    %v1359 = vadd.f32 %v1357, %v1358
    %v1360 = vrot.slane %v1359, 2
    %v1361 = vadd.f32 %v1359, %v1360
    %v1362 = vrot.slane %v1361, 1
    %v1363 = vadd.f32 %v1361, %v1362
    %v1364 = vrcp.pop %v1318
    %v1365 = vrcp.pop %v1363
    %v1366 = vmul.f32 %v1214, %v1364
    %v1367 = vmul.f32 %v1216, %v1365
    %v1368 = vmul.f32 %v1218, %v1364
    %v1369 = vmul.f32 %v1220, %v1365
    %v1370 = vmul.f32 %v1222, %v1364
    %v1371 = vmul.f32 %v1224, %v1365
    %v1372 = vmul.f32 %v1226, %v1364
    %v1373 = vmul.f32 %v1228, %v1365
    %v1374 = vmul.f32 %v1230, %v1364
    %v1375 = vmul.f32 %v1232, %v1365
    %v1376 = vmul.f32 %v1234, %v1364
    %v1377 = vmul.f32 %v1236, %v1365
    %v1378 = vmul.f32 %v1238, %v1364
    %v1379 = vmul.f32 %v1240, %v1365
    %v1380 = vmul.f32 %v1242, %v1364
    %v1381 = vmul.f32 %v1244, %v1365
    %v1382 = vmul.f32 %v1246, %v1364
    %v1383 = vmul.f32 %v1248, %v1365
    %v1384 = vmul.f32 %v1250, %v1364
    %v1385 = vmul.f32 %v1252, %v1365
    %v1386 = vmul.f32 %v1254, %v1364
    %v1387 = vmul.f32 %v1256, %v1365
    %v1388 = vmul.f32 %v1258, %v1364
    %v1389 = vmul.f32 %v1260, %v1365
    %v1390 = vmul.f32 %v1262, %v1364
    %v1391 = vmul.f32 %v1264, %v1365
    %v1392 = vmul.f32 %v1266, %v1364
    %v1393 = vmul.f32 %v1268, %v1365
    %v1394 = vmul.f32 %v1270, %v1364
    %v1395 = vmul.f32 %v1272, %v1365
    %v1396 = vmul.f32 %v1274, %v1364
    %v1397 = vmul.f32 %v1276, %v1365
    %v1398 = vmul.f32 %v1278, %v1364
    %v1399 = vmul.f32 %v1280, %v1365
    %v1400 = vmul.f32 %v1282, %v1364
    %v1401 = vmul.f32 %v1284, %v1365
    %v1402 = vmul.f32 %v1286, %v1364
    %v1403 = vmul.f32 %v1288, %v1365
    %v1404 = vmul.f32 %v1290, %v1364
    %v1405 = vmul.f32 %v1292, %v1365
    %v1406 = vld [vmem:[%s3] sm:$0xff]
    %v1407 = vld [vmem:[%s3 + $0x8] sm:$0xff]
    %v1408 = vld [vmem:[%s3 + $0x10] sm:$0xff]
    %v1409 = vld [vmem:[%s3 + $0x18] sm:$0xff]
    %v1411 = vsel %vm145, %v1407, 0
    %v1414 = vsel %vm145, %v1409, 0
    %v1417 = vsel %vm497, %v784, 0
    %v1420 = vsel %vm497, %v785, 0
    %1422 = vmatpush.msra.mxu0 %v776
    %1423 = vmatpush.msra.mxu0 %v774
    %1424 = vmatpush.msra.mxu0 %v772
    %1425 = vmatpush.msra.mxu0 %v770
    %1426 = vmatpush.msra.mxu0 %v768
    %1427 = vmatpush.msra.mxu0 %v766
    %1428 = vmatpush.msra.mxu0 %v764
    %1429 = vmatpush.msra.mxu0 %v762
    %1430 = vmatpush.msra.mxu0 %v760
    %1431 = vmatpush.msra.mxu0 %v758
    %1432 = vmatpush.msra.mxu0 %v756
    %1433 = vmatpush.msra.mxu0 %v754
    %1434 = vmatpush.msra.mxu0 %v752
    %1435 = vmatpush.msra.mxu0 %v750
    %1436 = vmatpush.msra.mxu0 %v748
    %1437 = vmatpush.msra.mxu0 %v746
    %1438 = vmatmul.f32.gmra.mxu0 %v1406
    %v1439 = vpop.f32.mrf.mxu0
    %v1440 = vadd.f32 0.0, %v1439
    %1441 = vmatmul.f32.gmra.mxu0 %v1408
    %v1442 = vpop.f32.mrf.mxu0
    %v1443 = vadd.f32 0.0, %v1442
    %1444 = vdwg.mxu0
    %1445 = vmatpush.msra.mxu0 0.0
    %1446 = vmatpush.msra.mxu0 0.0
    %1447 = vmatpush.msra.mxu0 0.0
    %1448 = vmatpush.msra.mxu0 0.0
    %1449 = vmatpush.msra.mxu0 0.0
    %1450 = vmatpush.msra.mxu0 0.0
    %1451 = vmatpush.msra.mxu0 0.0
    %1452 = vmatpush.msra.mxu0 0.0
    %1453 = vmatpush.msra.mxu0 0.0
    %1454 = vmatpush.msra.mxu0 0.0
    %1455 = vmatpush.msra.mxu0 0.0
    %1456 = vmatpush.msra.mxu0 0.0
    %1457 = vmatpush.msra.mxu0 %v1417
    %1458 = vmatpush.msra.mxu0 %v782
    %1459 = vmatpush.msra.mxu0 %v780
    %1460 = vmatpush.msra.mxu0 %v778
    %1461 = vmatmul.f32.gmra.mxu0 %v1411
    %v1462 = vpop.f32.mrf.mxu0
    %v1463 = vadd.f32 %v1440, %v1462
    %1464 = vmatmul.f32.gmra.mxu0 %v1414
    %v1465 = vpop.f32.mrf.mxu0
    %v1466 = vadd.f32 %v1443, %v1465
    %1467 = vdwg.mxu0
    %1468 = vmatpush.msra.mxu0 %v777
    %1469 = vmatpush.msra.mxu0 %v775
    %1470 = vmatpush.msra.mxu0 %v773
    %1471 = vmatpush.msra.mxu0 %v771
    %1472 = vmatpush.msra.mxu0 %v769
    %1473 = vmatpush.msra.mxu0 %v767
    %1474 = vmatpush.msra.mxu0 %v765
    %1475 = vmatpush.msra.mxu0 %v763
    %1476 = vmatpush.msra.mxu0 %v761
    %1477 = vmatpush.msra.mxu0 %v759
    %1478 = vmatpush.msra.mxu0 %v757
    %1479 = vmatpush.msra.mxu0 %v755
    %1480 = vmatpush.msra.mxu0 %v753
    %1481 = vmatpush.msra.mxu0 %v751
    %1482 = vmatpush.msra.mxu0 %v749
    %1483 = vmatpush.msra.mxu0 %v747
    %1484 = vmatmul.f32.gmra.mxu0 %v1406
    %v1485 = vpop.f32.mrf.mxu0
    %v1486 = vadd.f32 0.0, %v1485
    %1487 = vmatmul.f32.gmra.mxu0 %v1408
    %v1488 = vpop.f32.mrf.mxu0
    %v1489 = vadd.f32 0.0, %v1488
    %1490 = vdwg.mxu0
    %1491 = vmatpush.msra.mxu0 0.0
    %1492 = vmatpush.msra.mxu0 0.0
    %1493 = vmatpush.msra.mxu0 0.0
    %1494 = vmatpush.msra.mxu0 0.0
    %1495 = vmatpush.msra.mxu0 0.0
    %1496 = vmatpush.msra.mxu0 0.0
    %1497 = vmatpush.msra.mxu0 0.0
    %1498 = vmatpush.msra.mxu0 0.0
    %1499 = vmatpush.msra.mxu0 0.0
    %1500 = vmatpush.msra.mxu0 0.0
    %1501 = vmatpush.msra.mxu0 0.0
    %1502 = vmatpush.msra.mxu0 0.0
    %1503 = vmatpush.msra.mxu0 %v1420
    %1504 = vmatpush.msra.mxu0 %v783
    %1505 = vmatpush.msra.mxu0 %v781
    %1506 = vmatpush.msra.mxu0 %v779
    %1507 = vmatmul.f32.gmra.mxu0 %v1411
    %v1508 = vpop.f32.mrf.mxu0
    %v1509 = vadd.f32 %v1486, %v1508
    %1510 = vmatmul.f32.gmra.mxu0 %v1414
    %v1511 = vpop.f32.mrf.mxu0
    %v1512 = vadd.f32 %v1489, %v1511
    %1513 = vdwg.mxu0
    %v1514 = vld [vmem:[%s4] sm:$0xff]
    %v1515 = vld [vmem:[%s4 + $0x8] sm:$0xff]
    %v1516 = vld [vmem:[%s4 + $0x10] sm:$0xff]
    %v1517 = vld [vmem:[%s4 + $0x18] sm:$0xff]
    %v1519 = vsel %vm145, %v1515, 0
    %v1522 = vsel %vm145, %v1517, 0
    %v1525 = vsel %vm497, %v1404, 0
    %v1528 = vsel %vm497, %v1405, 0
    %1530 = vmatpush.msra.mxu0 %v1396
    %1531 = vmatpush.msra.mxu0 %v1394
    %1532 = vmatpush.msra.mxu0 %v1392
    %1533 = vmatpush.msra.mxu0 %v1390
    %1534 = vmatpush.msra.mxu0 %v1388
    %1535 = vmatpush.msra.mxu0 %v1386
    %1536 = vmatpush.msra.mxu0 %v1384
    %1537 = vmatpush.msra.mxu0 %v1382
    %1538 = vmatpush.msra.mxu0 %v1380
    %1539 = vmatpush.msra.mxu0 %v1378
    %1540 = vmatpush.msra.mxu0 %v1376
    %1541 = vmatpush.msra.mxu0 %v1374
    %1542 = vmatpush.msra.mxu0 %v1372
    %1543 = vmatpush.msra.mxu0 %v1370
    %1544 = vmatpush.msra.mxu0 %v1368
    %1545 = vmatpush.msra.mxu0 %v1366
    %1546 = vmatmul.f32.gmra.mxu0 %v1514
    %v1547 = vpop.f32.mrf.mxu0
    %v1548 = vadd.f32 0.0, %v1547
    %1549 = vmatmul.f32.gmra.mxu0 %v1516
    %v1550 = vpop.f32.mrf.mxu0
    %v1551 = vadd.f32 0.0, %v1550
    %1552 = vdwg.mxu0
    %1553 = vmatpush.msra.mxu0 0.0
    %1554 = vmatpush.msra.mxu0 0.0
    %1555 = vmatpush.msra.mxu0 0.0
    %1556 = vmatpush.msra.mxu0 0.0
    %1557 = vmatpush.msra.mxu0 0.0
    %1558 = vmatpush.msra.mxu0 0.0
    %1559 = vmatpush.msra.mxu0 0.0
    %1560 = vmatpush.msra.mxu0 0.0
    %1561 = vmatpush.msra.mxu0 0.0
    %1562 = vmatpush.msra.mxu0 0.0
    %1563 = vmatpush.msra.mxu0 0.0
    %1564 = vmatpush.msra.mxu0 0.0
    %1565 = vmatpush.msra.mxu0 %v1525
    %1566 = vmatpush.msra.mxu0 %v1402
    %1567 = vmatpush.msra.mxu0 %v1400
    %1568 = vmatpush.msra.mxu0 %v1398
    %1569 = vmatmul.f32.gmra.mxu0 %v1519
    %v1570 = vpop.f32.mrf.mxu0
    %v1571 = vadd.f32 %v1548, %v1570
    %1572 = vmatmul.f32.gmra.mxu0 %v1522
    %v1573 = vpop.f32.mrf.mxu0
    %v1574 = vadd.f32 %v1551, %v1573
    %1575 = vdwg.mxu0
    %1576 = vmatpush.msra.mxu0 %v1397
    %1577 = vmatpush.msra.mxu0 %v1395
    %1578 = vmatpush.msra.mxu0 %v1393
    %1579 = vmatpush.msra.mxu0 %v1391
    %1580 = vmatpush.msra.mxu0 %v1389
    %1581 = vmatpush.msra.mxu0 %v1387
    %1582 = vmatpush.msra.mxu0 %v1385
    %1583 = vmatpush.msra.mxu0 %v1383
    %1584 = vmatpush.msra.mxu0 %v1381
    %1585 = vmatpush.msra.mxu0 %v1379
    %1586 = vmatpush.msra.mxu0 %v1377
    %1587 = vmatpush.msra.mxu0 %v1375
    %1588 = vmatpush.msra.mxu0 %v1373
    %1589 = vmatpush.msra.mxu0 %v1371
    %1590 = vmatpush.msra.mxu0 %v1369
    %1591 = vmatpush.msra.mxu0 %v1367
    %1592 = vmatmul.f32.gmra.mxu0 %v1514
    %v1593 = vpop.f32.mrf.mxu0
    %v1594 = vadd.f32 0.0, %v1593
    %1595 = vmatmul.f32.gmra.mxu0 %v1516
    %v1596 = vpop.f32.mrf.mxu0
    %v1597 = vadd.f32 0.0, %v1596
    %1598 = vdwg.mxu0
    %1599 = vmatpush.msra.mxu0 0.0
    %1600 = vmatpush.msra.mxu0 0.0
    %1601 = vmatpush.msra.mxu0 0.0
    %1602 = vmatpush.msra.mxu0 0.0
    %1603 = vmatpush.msra.mxu0 0.0
    %1604 = vmatpush.msra.mxu0 0.0
    %1605 = vmatpush.msra.mxu0 0.0
    %1606 = vmatpush.msra.mxu0 0.0
    %1607 = vmatpush.msra.mxu0 0.0
    %1608 = vmatpush.msra.mxu0 0.0
    %1609 = vmatpush.msra.mxu0 0.0
    %1610 = vmatpush.msra.mxu0 0.0
    %1611 = vmatpush.msra.mxu0 %v1528
    %1612 = vmatpush.msra.mxu0 %v1403
    %1613 = vmatpush.msra.mxu0 %v1401
    %1614 = vmatpush.msra.mxu0 %v1399
    %1615 = vmatmul.f32.gmra.mxu0 %v1519
    %v1616 = vpop.f32.mrf.mxu0
    %v1617 = vadd.f32 %v1594, %v1616
    %1618 = vmatmul.f32.gmra.mxu0 %v1522
    %v1619 = vpop.f32.mrf.mxu0
    %v1620 = vadd.f32 %v1597, %v1619
    %1621 = vdwg.mxu0
    %v1622 = vld [vmem:[%s9] sm:$0xff]
    %v1623 = vld [vmem:[%s9 + $0x8] sm:$0xff]
    %v1624 = vld [vmem:[%s9 + $0x10] sm:$0xff]
    %v1625 = vld [vmem:[%s9 + $0x18] sm:$0xff]
    %v1626 = vld [vmem:[%s9 + $0x20] sm:$0xff]
    %v1627 = vld [vmem:[%s9 + $0x28] sm:$0xff]
    %v1628 = vld [vmem:[%s9 + $0x30] sm:$0xff]
    %v1629 = vld [vmem:[%s9 + $0x38] sm:$0xff]
    %v1630 = vld [vmem:[%s9 + $0x40] sm:$0xff]
    %v1631 = vld [vmem:[%s9 + $0x48] sm:$0xff]
    %v1632 = vld [vmem:[%s9 + $0x50] sm:$0xff]
    %v1633 = vld [vmem:[%s9 + $0x58] sm:$0xff]
    %v1634 = vld [vmem:[%s9 + $0x60] sm:$0xff]
    %v1635 = vld [vmem:[%s9 + $0x68] sm:$0xff]
    %v1636 = vld [vmem:[%s9 + $0x70] sm:$0xff]
    %v1637 = vld [vmem:[%s9 + $0x78] sm:$0xff]
    %v1638 = vld [vmem:[%s9 + $0x80] sm:$0xff]
    %v1639 = vld [vmem:[%s9 + $0x88] sm:$0xff]
    %v1640 = vld [vmem:[%s9 + $0x90] sm:$0xff]
    %v1641 = vld [vmem:[%s9 + $0x98] sm:$0xf]
    %v1642 = vld [vmem:[%s10] sm:$0xff]
    %v1643 = vld [vmem:[%s10 + $0x8] sm:$0xff]
    %v1644 = vld [vmem:[%s10 + $0x10] sm:$0xff]
    %v1645 = vld [vmem:[%s10 + $0x18] sm:$0xff]
    %v1646 = vld [vmem:[%s11] sm:$0x1]
    %v1648 = vperm.slane %v1646, 0
    %v1651 = vsel %vm145, %v1509, 0
    %v1654 = vsel %vm145, %v1512, 0
    %v1657 = vsel %vm497, %v1641, 0
    %1659 = vmatpush.msra.mxu0 %v1637
    %1660 = vmatpush.msra.mxu0 %v1636
    %1661 = vmatpush.msra.mxu0 %v1635
    %1662 = vmatpush.msra.mxu0 %v1634
    %1663 = vmatpush.msra.mxu0 %v1633
    %1664 = vmatpush.msra.mxu0 %v1632
    %1665 = vmatpush.msra.mxu0 %v1631
    %1666 = vmatpush.msra.mxu0 %v1630
    %1667 = vmatpush.msra.mxu0 %v1629
    %1668 = vmatpush.msra.mxu0 %v1628
    %1669 = vmatpush.msra.mxu0 %v1627
    %1670 = vmatpush.msra.mxu0 %v1626
    %1671 = vmatpush.msra.mxu0 %v1625
    %1672 = vmatpush.msra.mxu0 %v1624
    %1673 = vmatpush.msra.mxu0 %v1623
    %1674 = vmatpush.msra.mxu0 %v1622
    %1675 = vmatmul.f32.gmra.mxu0 %v1463
    %v1676 = vpop.f32.mrf.mxu0
    %v1677 = vadd.f32 %v1648, %v1676
    %1678 = vmatmul.f32.gmra.mxu0 %v1466
    %v1679 = vpop.f32.mrf.mxu0
    %v1680 = vadd.f32 %v1648, %v1679
    %1681 = vdwg.mxu0
    %1682 = vmatpush.msra.mxu0 0.0
    %1683 = vmatpush.msra.mxu0 0.0
    %1684 = vmatpush.msra.mxu0 0.0
    %1685 = vmatpush.msra.mxu0 0.0
    %1686 = vmatpush.msra.mxu0 0.0
    %1687 = vmatpush.msra.mxu0 0.0
    %1688 = vmatpush.msra.mxu0 0.0
    %1689 = vmatpush.msra.mxu0 0.0
    %1690 = vmatpush.msra.mxu0 0.0
    %1691 = vmatpush.msra.mxu0 0.0
    %1692 = vmatpush.msra.mxu0 0.0
    %1693 = vmatpush.msra.mxu0 0.0
    %1694 = vmatpush.msra.mxu0 %v1657
    %1695 = vmatpush.msra.mxu0 %v1640
    %1696 = vmatpush.msra.mxu0 %v1639
    %1697 = vmatpush.msra.mxu0 %v1638
    %1698 = vmatmul.f32.gmra.mxu0 %v1651
    %v1699 = vpop.f32.mrf.mxu0
    %v1700 = vadd.f32 %v1677, %v1699
    %1701 = vmatmul.f32.gmra.mxu0 %v1654
    %v1702 = vpop.f32.mrf.mxu0
    %v1703 = vadd.f32 %v1680, %v1702
    %1704 = vdwg.mxu0
    %vm1705 = vcmask 261120
    %v1707 = vsel %vm1705, 0.0, 0
    %1709 = vmatpush.msra.mxu0 0.0
    %1710 = vmatpush.msra.mxu0 0.0
    %1711 = vmatpush.msra.mxu0 0.0
    %1712 = vmatpush.msra.mxu0 0.0
    %1713 = vmatpush.msra.mxu0 0.0
    %1714 = vmatpush.msra.mxu0 0.0
    %1715 = vmatpush.msra.mxu0 0.0
    %1716 = vmatpush.msra.mxu0 0.0
    %1717 = vmatpush.msra.mxu0 0.0
    %1718 = vmatpush.msra.mxu0 0.0
    %1719 = vmatpush.msra.mxu0 0.0
    %1720 = vmatpush.msra.mxu0 0.0
    %1721 = vmatpush.msra.mxu0 %v1645
    %1722 = vmatpush.msra.mxu0 %v1644
    %1723 = vmatpush.msra.mxu0 %v1643
    %1724 = vmatpush.msra.mxu0 %v1642
    %1725 = vmatmul.f32.gmra.mxu0 %v1707
    %v1726 = vpop.f32.mrf.mxu0
    %v1727 = vadd.f32 0.0, %v1726
    %1728 = vdwg.mxu0
    %v1729 = vadd.f32 %v1700, %v1727
    %v1730 = vxor.u32 %v1729, 2147483648
    %v1731 = vmul.f32 %v1730, 1.442695
    %v1732 = vpow.pop %v1731
    %v1733 = vadd.f32 %v1732, 1.0
    %v1734 = vrcp.pop %v1733
    %v1735 = vmul.f32 %v1733, %v1734
    %v1736 = vsub.f32 1.0, %v1735
    %v1737 = vmul.f32 %v1734, %v1736
    %v1738 = vadd.f32 %v1734, %v1737
    %vm1739 = vweird.f32 %v1733
    %vm1740 = vweird.f32 %v1734
    %vm1741 = vmor %vm1739, %vm1740
    %v1742 = vsel %vm1741, %v1734, %v1738
    %v1743 = vand.u32 2147483647, %v1733
    %vm1744 = vcmp.eq.f32.partialorder %v1743, 8.507059e+37
    %v1745 = vand.u32 %v1733, 2147483648
    %v1746 = vor.u32 1.1754944e-38, %v1745
    %v1747 = vsel %vm1744, %v1746, %v1742
    %v1748 = vmul.f32 1.0, %v1747
    %v1749 = vtanh.pop %v1729
    %v1750 = vmul.f32 %v1748, 0.0
    %1752 = vrot.lane.b32.xlu0 %v1749, 64
    %v1753 = vpop.permute.xlu0 %1752
    %v1755 = vmul.f32 %v1748, %v1753
    %1757 = vrot.lane.b32.xlu0 %v1755, 32
    %v1758 = vpop.permute.xlu0 %1757
    %v1760 = vadd.f32 %v1750, %v1758
    %v1761 = vtanh.pop %v1760
    %1763 = vrot.lane.b32.xlu0 %v1761, 64
    %v1764 = vpop.permute.xlu0 %1763
    %v1766 = vmul.f32 %v1748, %v1764
    %1768 = vrot.lane.b32.xlu0 %v1766, 32
    %v1769 = vpop.permute.xlu0 %1768
    %v1770 = vsel %vm1705, %v1769, 0
    %1772 = vmatpush.msra.mxu0 0.0
    %1773 = vmatpush.msra.mxu0 0.0
    %1774 = vmatpush.msra.mxu0 0.0
    %1775 = vmatpush.msra.mxu0 0.0
    %1776 = vmatpush.msra.mxu0 0.0
    %1777 = vmatpush.msra.mxu0 0.0
    %1778 = vmatpush.msra.mxu0 0.0
    %1779 = vmatpush.msra.mxu0 0.0
    %1780 = vmatpush.msra.mxu0 0.0
    %1781 = vmatpush.msra.mxu0 0.0
    %1782 = vmatpush.msra.mxu0 0.0
    %1783 = vmatpush.msra.mxu0 0.0
    %1784 = vmatpush.msra.mxu0 %v1645
    %1785 = vmatpush.msra.mxu0 %v1644
    %1786 = vmatpush.msra.mxu0 %v1643
    %1787 = vmatpush.msra.mxu0 %v1642
    %1788 = vmatmul.f32.gmra.mxu0 %v1770
    %v1789 = vpop.f32.mrf.mxu0
    %v1790 = vadd.f32 0.0, %v1789
    %1791 = vdwg.mxu0
    %v1793 = vrot.slane %v1790, 4
    %v1795 = vadd.f32 %v1700, %v1793
    %v1796 = vxor.u32 %v1795, 2147483648
    %v1797 = vmul.f32 %v1796, 1.442695
    %v1798 = vpow.pop %v1797
    %v1799 = vadd.f32 %v1798, 1.0
    %v1800 = vrcp.pop %v1799
    %v1801 = vmul.f32 %v1799, %v1800
    %v1802 = vsub.f32 1.0, %v1801
    %v1803 = vmul.f32 %v1800, %v1802
    %v1804 = vadd.f32 %v1800, %v1803
    %vm1805 = vweird.f32 %v1799
    %vm1806 = vweird.f32 %v1800
    %vm1807 = vmor %vm1805, %vm1806
    %v1808 = vsel %vm1807, %v1800, %v1804
    %v1809 = vand.u32 2147483647, %v1799
    %vm1810 = vcmp.eq.f32.partialorder %v1809, 8.507059e+37
    %v1811 = vand.u32 %v1799, 2147483648
    %v1812 = vor.u32 1.1754944e-38, %v1811
    %v1813 = vsel %vm1810, %v1812, %v1808
    %v1814 = vmul.f32 1.0, %v1813
    %v1815 = vtanh.pop %v1795
    %v1817 = vrot.slane %v1760, 4
    %v1819 = vmul.f32 %v1814, %v1817
    %1821 = vrot.lane.b32.xlu0 %v1815, 64
    %v1822 = vpop.permute.xlu0 %1821
    %v1824 = vmul.f32 %v1814, %v1822
    %1826 = vrot.lane.b32.xlu0 %v1824, 32
    %v1827 = vpop.permute.xlu0 %1826
    %v1829 = vadd.f32 %v1819, %v1827
    %v1830 = vtanh.pop %v1829
    %1832 = vrot.lane.b32.xlu0 %v1830, 64
    %v1833 = vpop.permute.xlu0 %1832
    %v1835 = vmul.f32 %v1814, %v1833
    %v1837 = vrot.slane %v1835, 4
    %1838 = vrot.lane.b32.xlu0 %v1837, 32
    %v1839 = vpop.permute.xlu0 %1838
    %v1840 = vsel %vm1705, %v1839, 0
    %1842 = vmatpush.msra.mxu0 0.0
    %1843 = vmatpush.msra.mxu0 0.0
    %1844 = vmatpush.msra.mxu0 0.0
    %1845 = vmatpush.msra.mxu0 0.0
    %1846 = vmatpush.msra.mxu0 0.0
    %1847 = vmatpush.msra.mxu0 0.0
    %1848 = vmatpush.msra.mxu0 0.0
    %1849 = vmatpush.msra.mxu0 0.0
    %1850 = vmatpush.msra.mxu0 0.0
    %1851 = vmatpush.msra.mxu0 0.0
    %1852 = vmatpush.msra.mxu0 0.0
    %1853 = vmatpush.msra.mxu0 0.0
    %1854 = vmatpush.msra.mxu0 %v1645
    %1855 = vmatpush.msra.mxu0 %v1644
    %1856 = vmatpush.msra.mxu0 %v1643
    %1857 = vmatpush.msra.mxu0 %v1642
    %1858 = vmatmul.f32.gmra.mxu0 %v1840
    %v1859 = vpop.f32.mrf.mxu0
    %v1860 = vadd.f32 0.0, %v1859
    %1861 = vdwg.mxu0
    %v1862 = vadd.f32 %v1703, %v1860
    %v1863 = vxor.u32 %v1862, 2147483648
    %v1864 = vmul.f32 %v1863, 1.442695
    %v1865 = vpow.pop %v1864
    %v1866 = vadd.f32 %v1865, 1.0
    %v1867 = vrcp.pop %v1866
    %v1868 = vmul.f32 %v1866, %v1867
    %v1869 = vsub.f32 1.0, %v1868
    %v1870 = vmul.f32 %v1867, %v1869
    %v1871 = vadd.f32 %v1867, %v1870
    %vm1872 = vweird.f32 %v1866
    %vm1873 = vweird.f32 %v1867
    %vm1874 = vmor %vm1872, %vm1873
    %v1875 = vsel %vm1874, %v1867, %v1871
    %v1876 = vand.u32 2147483647, %v1866
    %vm1877 = vcmp.eq.f32.partialorder %v1876, 8.507059e+37
    %v1878 = vand.u32 %v1866, 2147483648
    %v1879 = vor.u32 1.1754944e-38, %v1878
    %v1880 = vsel %vm1877, %v1879, %v1875
    %v1881 = vmul.f32 1.0, %v1880
    %v1882 = vtanh.pop %v1862
    %v1884 = vrot.slane %v1829, 4
    %v1886 = vmul.f32 %v1881, %v1884
    %1888 = vrot.lane.b32.xlu0 %v1882, 64
    %v1889 = vpop.permute.xlu0 %1888
    %v1891 = vmul.f32 %v1881, %v1889
    %1893 = vrot.lane.b32.xlu0 %v1891, 32
    %v1894 = vpop.permute.xlu0 %1893
    %v1896 = vadd.f32 %v1886, %v1894
    %v1897 = vtanh.pop %v1896
    %1899 = vrot.lane.b32.xlu0 %v1897, 64
    %v1900 = vpop.permute.xlu0 %1899
    %v1902 = vmul.f32 %v1881, %v1900
    %1904 = vrot.lane.b32.xlu0 %v1902, 32
    %v1905 = vpop.permute.xlu0 %1904
    %v1906 = vsel %vm1705, %v1905, 0
    %1908 = vmatpush.msra.mxu0 0.0
    %1909 = vmatpush.msra.mxu0 0.0
    %1910 = vmatpush.msra.mxu0 0.0
    %1911 = vmatpush.msra.mxu0 0.0
    %1912 = vmatpush.msra.mxu0 0.0
    %1913 = vmatpush.msra.mxu0 0.0
    %1914 = vmatpush.msra.mxu0 0.0
    %1915 = vmatpush.msra.mxu0 0.0
    %1916 = vmatpush.msra.mxu0 0.0
    %1917 = vmatpush.msra.mxu0 0.0
    %1918 = vmatpush.msra.mxu0 0.0
    %1919 = vmatpush.msra.mxu0 0.0
    %1920 = vmatpush.msra.mxu0 %v1645
    %1921 = vmatpush.msra.mxu0 %v1644
    %1922 = vmatpush.msra.mxu0 %v1643
    %1923 = vmatpush.msra.mxu0 %v1642
    %1924 = vmatmul.f32.gmra.mxu0 %v1906
    %v1925 = vpop.f32.mrf.mxu0
    %v1926 = vadd.f32 0.0, %v1925
    %1927 = vdwg.mxu0
    %v1929 = vrot.slane %v1926, 4
    %v1931 = vadd.f32 %v1703, %v1929
    %v1932 = vxor.u32 %v1931, 2147483648
    %v1933 = vmul.f32 %v1932, 1.442695
    %v1934 = vpow.pop %v1933
    %v1935 = vadd.f32 %v1934, 1.0
    %v1936 = vrcp.pop %v1935
    %v1937 = vmul.f32 %v1935, %v1936
    %v1938 = vsub.f32 1.0, %v1937
    %v1939 = vmul.f32 %v1936, %v1938
    %v1940 = vadd.f32 %v1936, %v1939
    %vm1941 = vweird.f32 %v1935
    %vm1942 = vweird.f32 %v1936
    %vm1943 = vmor %vm1941, %vm1942
    %v1944 = vsel %vm1943, %v1936, %v1940
    %v1945 = vand.u32 2147483647, %v1935
    %vm1946 = vcmp.eq.f32.partialorder %v1945, 8.507059e+37
    %v1947 = vand.u32 %v1935, 2147483648
    %v1948 = vor.u32 1.1754944e-38, %v1947
    %v1949 = vsel %vm1946, %v1948, %v1944
    %v1950 = vmul.f32 1.0, %v1949
    %v1951 = vtanh.pop %v1931
    %v1953 = vrot.slane %v1896, 4
    %v1955 = vmul.f32 %v1950, %v1953
    %1957 = vrot.lane.b32.xlu0 %v1951, 64
    %v1958 = vpop.permute.xlu0 %1957
    %v1960 = vmul.f32 %v1950, %v1958
    %1962 = vrot.lane.b32.xlu0 %v1960, 32
    %v1963 = vpop.permute.xlu0 %1962
    %v1965 = vadd.f32 %v1955, %v1963
    %v1966 = vtanh.pop %v1965
    %1968 = vrot.lane.b32.xlu0 %v1966, 64
    %v1969 = vpop.permute.xlu0 %1968
    %v1971 = vmul.f32 %v1950, %v1969
    %v1972 = vld [vmem:[%s12] sm:$0xff]
    %v1973 = vld [vmem:[%s12 + $0x8] sm:$0xff]
    %v1974 = vld [vmem:[%s12 + $0x10] sm:$0xff]
    %v1975 = vld [vmem:[%s12 + $0x18] sm:$0xff]
    %v1976 = vld [vmem:[%s12 + $0x20] sm:$0xff]
    %v1977 = vld [vmem:[%s12 + $0x28] sm:$0xff]
    %v1978 = vld [vmem:[%s12 + $0x30] sm:$0xff]
    %v1979 = vld [vmem:[%s12 + $0x38] sm:$0xff]
    %v1980 = vld [vmem:[%s12 + $0x40] sm:$0xff]
    %v1981 = vld [vmem:[%s12 + $0x48] sm:$0xff]
    %v1982 = vld [vmem:[%s12 + $0x50] sm:$0xff]
    %v1983 = vld [vmem:[%s12 + $0x58] sm:$0xff]
    %v1984 = vld [vmem:[%s12 + $0x60] sm:$0xff]
    %v1985 = vld [vmem:[%s12 + $0x68] sm:$0xff]
    %v1986 = vld [vmem:[%s12 + $0x70] sm:$0xff]
    %v1987 = vld [vmem:[%s12 + $0x78] sm:$0xff]
    %v1988 = vld [vmem:[%s12 + $0x80] sm:$0xff]
    %v1989 = vld [vmem:[%s12 + $0x88] sm:$0xff]
    %v1990 = vld [vmem:[%s12 + $0x90] sm:$0xff]
    %v1991 = vld [vmem:[%s12 + $0x98] sm:$0xf]
    %v1992 = vld [vmem:[%s13] sm:$0xff]
    %v1993 = vld [vmem:[%s13 + $0x8] sm:$0xff]
    %v1994 = vld [vmem:[%s13 + $0x10] sm:$0xff]
    %v1995 = vld [vmem:[%s13 + $0x18] sm:$0xff]
    %v1996 = vld [vmem:[%s14] sm:$0x1]
    %v1998 = vperm.slane %v1996, 0
    %v2001 = vsel %vm145, %v1617, 0
    %v2004 = vsel %vm145, %v1620, 0
    %v2007 = vsel %vm497, %v1991, 0
    %2009 = vmatpush.msra.mxu0 %v1987
    %2010 = vmatpush.msra.mxu0 %v1986
    %2011 = vmatpush.msra.mxu0 %v1985
    %2012 = vmatpush.msra.mxu0 %v1984
    %2013 = vmatpush.msra.mxu0 %v1983
    %2014 = vmatpush.msra.mxu0 %v1982
    %2015 = vmatpush.msra.mxu0 %v1981
    %2016 = vmatpush.msra.mxu0 %v1980
    %2017 = vmatpush.msra.mxu0 %v1979
    %2018 = vmatpush.msra.mxu0 %v1978
    %2019 = vmatpush.msra.mxu0 %v1977
    %2020 = vmatpush.msra.mxu0 %v1976
    %2021 = vmatpush.msra.mxu0 %v1975
    %2022 = vmatpush.msra.mxu0 %v1974
    %2023 = vmatpush.msra.mxu0 %v1973
    %2024 = vmatpush.msra.mxu0 %v1972
    %2025 = vmatmul.f32.gmra.mxu0 %v1571
    %v2026 = vpop.f32.mrf.mxu0
    %v2027 = vadd.f32 %v1998, %v2026
    %2028 = vmatmul.f32.gmra.mxu0 %v1574
    %v2029 = vpop.f32.mrf.mxu0
    %v2030 = vadd.f32 %v1998, %v2029
    %2031 = vdwg.mxu0
    %2032 = vmatpush.msra.mxu0 0.0
    %2033 = vmatpush.msra.mxu0 0.0
    %2034 = vmatpush.msra.mxu0 0.0
    %2035 = vmatpush.msra.mxu0 0.0
    %2036 = vmatpush.msra.mxu0 0.0
    %2037 = vmatpush.msra.mxu0 0.0
    %2038 = vmatpush.msra.mxu0 0.0
    %2039 = vmatpush.msra.mxu0 0.0
    %2040 = vmatpush.msra.mxu0 0.0
    %2041 = vmatpush.msra.mxu0 0.0
    %2042 = vmatpush.msra.mxu0 0.0
    %2043 = vmatpush.msra.mxu0 0.0
    %2044 = vmatpush.msra.mxu0 %v2007
    %2045 = vmatpush.msra.mxu0 %v1990
    %2046 = vmatpush.msra.mxu0 %v1989
    %2047 = vmatpush.msra.mxu0 %v1988
    %2048 = vmatmul.f32.gmra.mxu0 %v2001
    %v2049 = vpop.f32.mrf.mxu0
    %v2050 = vadd.f32 %v2027, %v2049
    %2051 = vmatmul.f32.gmra.mxu0 %v2004
    %v2052 = vpop.f32.mrf.mxu0
    %v2053 = vadd.f32 %v2030, %v2052
    %2054 = vdwg.mxu0
    %2055 = vmatpush.msra.mxu0 0.0
    %2056 = vmatpush.msra.mxu0 0.0
    %2057 = vmatpush.msra.mxu0 0.0
    %2058 = vmatpush.msra.mxu0 0.0
    %2059 = vmatpush.msra.mxu0 0.0
    %2060 = vmatpush.msra.mxu0 0.0
    %2061 = vmatpush.msra.mxu0 0.0
    %2062 = vmatpush.msra.mxu0 0.0
    %2063 = vmatpush.msra.mxu0 0.0
    %2064 = vmatpush.msra.mxu0 0.0
    %2065 = vmatpush.msra.mxu0 0.0
    %2066 = vmatpush.msra.mxu0 0.0
    %2067 = vmatpush.msra.mxu0 %v1995
    %2068 = vmatpush.msra.mxu0 %v1994
    %2069 = vmatpush.msra.mxu0 %v1993
    %2070 = vmatpush.msra.mxu0 %v1992
    %2071 = vmatmul.f32.gmra.mxu0 %v1707
    %v2072 = vpop.f32.mrf.mxu0
    %v2073 = vadd.f32 0.0, %v2072
    %2074 = vdwg.mxu0
    %v2075 = vadd.f32 %v2050, %v2073
    %v2076 = vxor.u32 %v2075, 2147483648
    %v2077 = vmul.f32 %v2076, 1.442695
    %v2078 = vpow.pop %v2077
    %v2079 = vadd.f32 %v2078, 1.0
    %v2080 = vrcp.pop %v2079
    %v2081 = vmul.f32 %v2079, %v2080
    %v2082 = vsub.f32 1.0, %v2081
    %v2083 = vmul.f32 %v2080, %v2082
    %v2084 = vadd.f32 %v2080, %v2083
    %vm2085 = vweird.f32 %v2079
    %vm2086 = vweird.f32 %v2080
    %vm2087 = vmor %vm2085, %vm2086
    %v2088 = vsel %vm2087, %v2080, %v2084
    %v2089 = vand.u32 2147483647, %v2079
    %vm2090 = vcmp.eq.f32.partialorder %v2089, 8.507059e+37
    %v2091 = vand.u32 %v2079, 2147483648
    %v2092 = vor.u32 1.1754944e-38, %v2091
    %v2093 = vsel %vm2090, %v2092, %v2088
    %v2094 = vmul.f32 1.0, %v2093
    %v2095 = vtanh.pop %v2075
    %v2096 = vmul.f32 %v2094, 0.0
    %2098 = vrot.lane.b32.xlu0 %v2095, 64
    %v2099 = vpop.permute.xlu0 %2098
    %v2101 = vmul.f32 %v2094, %v2099
    %2103 = vrot.lane.b32.xlu0 %v2101, 32
    %v2104 = vpop.permute.xlu0 %2103
    %v2106 = vadd.f32 %v2096, %v2104
    %v2107 = vtanh.pop %v2106
    %2109 = vrot.lane.b32.xlu0 %v2107, 64
    %v2110 = vpop.permute.xlu0 %2109
    %v2112 = vmul.f32 %v2094, %v2110
    %2114 = vrot.lane.b32.xlu0 %v2112, 32
    %v2115 = vpop.permute.xlu0 %2114
    %v2116 = vsel %vm1705, %v2115, 0
    %2118 = vmatpush.msra.mxu0 0.0
    %2119 = vmatpush.msra.mxu0 0.0
    %2120 = vmatpush.msra.mxu0 0.0
    %2121 = vmatpush.msra.mxu0 0.0
    %2122 = vmatpush.msra.mxu0 0.0
    %2123 = vmatpush.msra.mxu0 0.0
    %2124 = vmatpush.msra.mxu0 0.0
    %2125 = vmatpush.msra.mxu0 0.0
    %2126 = vmatpush.msra.mxu0 0.0
    %2127 = vmatpush.msra.mxu0 0.0
    %2128 = vmatpush.msra.mxu0 0.0
    %2129 = vmatpush.msra.mxu0 0.0
    %2130 = vmatpush.msra.mxu0 %v1995
    %2131 = vmatpush.msra.mxu0 %v1994
    %2132 = vmatpush.msra.mxu0 %v1993
    %2133 = vmatpush.msra.mxu0 %v1992
    %2134 = vmatmul.f32.gmra.mxu0 %v2116
    %v2135 = vpop.f32.mrf.mxu0
    %v2136 = vadd.f32 0.0, %v2135
    %2137 = vdwg.mxu0
    %v2139 = vrot.slane %v2136, 4
    %v2141 = vadd.f32 %v2050, %v2139
    %v2142 = vxor.u32 %v2141, 2147483648
    %v2143 = vmul.f32 %v2142, 1.442695
    %v2144 = vpow.pop %v2143
    %v2145 = vadd.f32 %v2144, 1.0
    %v2146 = vrcp.pop %v2145
    %v2147 = vmul.f32 %v2145, %v2146
    %v2148 = vsub.f32 1.0, %v2147
    %v2149 = vmul.f32 %v2146, %v2148
    %v2150 = vadd.f32 %v2146, %v2149
    %vm2151 = vweird.f32 %v2145
    %vm2152 = vweird.f32 %v2146
    %vm2153 = vmor %vm2151, %vm2152
    %v2154 = vsel %vm2153, %v2146, %v2150
    %v2155 = vand.u32 2147483647, %v2145
    %vm2156 = vcmp.eq.f32.partialorder %v2155, 8.507059e+37
    %v2157 = vand.u32 %v2145, 2147483648
    %v2158 = vor.u32 1.1754944e-38, %v2157
    %v2159 = vsel %vm2156, %v2158, %v2154
    %v2160 = vmul.f32 1.0, %v2159
    %v2161 = vtanh.pop %v2141
    %v2163 = vrot.slane %v2106, 4
    %v2165 = vmul.f32 %v2160, %v2163
    %2167 = vrot.lane.b32.xlu0 %v2161, 64
    %v2168 = vpop.permute.xlu0 %2167
    %v2170 = vmul.f32 %v2160, %v2168
    %2172 = vrot.lane.b32.xlu0 %v2170, 32
    %v2173 = vpop.permute.xlu0 %2172
    %v2175 = vadd.f32 %v2165, %v2173
    %v2176 = vtanh.pop %v2175
    %2178 = vrot.lane.b32.xlu0 %v2176, 64
    %v2179 = vpop.permute.xlu0 %2178
    %v2181 = vmul.f32 %v2160, %v2179
    %v2183 = vrot.slane %v2181, 4
    %2184 = vrot.lane.b32.xlu0 %v2183, 32
    %v2185 = vpop.permute.xlu0 %2184
    %v2186 = vsel %vm1705, %v2185, 0
    %2188 = vmatpush.msra.mxu0 0.0
    %2189 = vmatpush.msra.mxu0 0.0
    %2190 = vmatpush.msra.mxu0 0.0
    %2191 = vmatpush.msra.mxu0 0.0
    %2192 = vmatpush.msra.mxu0 0.0
    %2193 = vmatpush.msra.mxu0 0.0
    %2194 = vmatpush.msra.mxu0 0.0
    %2195 = vmatpush.msra.mxu0 0.0
    %2196 = vmatpush.msra.mxu0 0.0
    %2197 = vmatpush.msra.mxu0 0.0
    %2198 = vmatpush.msra.mxu0 0.0
    %2199 = vmatpush.msra.mxu0 0.0
    %2200 = vmatpush.msra.mxu0 %v1995
    %2201 = vmatpush.msra.mxu0 %v1994
    %2202 = vmatpush.msra.mxu0 %v1993
    %2203 = vmatpush.msra.mxu0 %v1992
    %2204 = vmatmul.f32.gmra.mxu0 %v2186
    %v2205 = vpop.f32.mrf.mxu0
    %v2206 = vadd.f32 0.0, %v2205
    %2207 = vdwg.mxu0
    %v2208 = vadd.f32 %v2053, %v2206
    %v2209 = vxor.u32 %v2208, 2147483648
    %v2210 = vmul.f32 %v2209, 1.442695
    %v2211 = vpow.pop %v2210
    %v2212 = vadd.f32 %v2211, 1.0
    %v2213 = vrcp.pop %v2212
    %v2214 = vmul.f32 %v2212, %v2213
    %v2215 = vsub.f32 1.0, %v2214
    %v2216 = vmul.f32 %v2213, %v2215
    %v2217 = vadd.f32 %v2213, %v2216
    %vm2218 = vweird.f32 %v2212
    %vm2219 = vweird.f32 %v2213
    %vm2220 = vmor %vm2218, %vm2219
    %v2221 = vsel %vm2220, %v2213, %v2217
    %v2222 = vand.u32 2147483647, %v2212
    %vm2223 = vcmp.eq.f32.partialorder %v2222, 8.507059e+37
    %v2224 = vand.u32 %v2212, 2147483648
    %v2225 = vor.u32 1.1754944e-38, %v2224
    %v2226 = vsel %vm2223, %v2225, %v2221
    %v2227 = vmul.f32 1.0, %v2226
    %v2228 = vtanh.pop %v2208
    %v2230 = vrot.slane %v2175, 4
    %v2232 = vmul.f32 %v2227, %v2230
    %2234 = vrot.lane.b32.xlu0 %v2228, 64
    %v2235 = vpop.permute.xlu0 %2234
    %v2237 = vmul.f32 %v2227, %v2235
    %2239 = vrot.lane.b32.xlu0 %v2237, 32
    %v2240 = vpop.permute.xlu0 %2239
    %v2242 = vadd.f32 %v2232, %v2240
    %v2243 = vtanh.pop %v2242
    %2245 = vrot.lane.b32.xlu0 %v2243, 64
    %v2246 = vpop.permute.xlu0 %2245
    %v2248 = vmul.f32 %v2227, %v2246
    %2250 = vrot.lane.b32.xlu0 %v2248, 32
    %v2251 = vpop.permute.xlu0 %2250
    %v2252 = vsel %vm1705, %v2251, 0
    %2254 = vmatpush.msra.mxu0 0.0
    %2255 = vmatpush.msra.mxu0 0.0
    %2256 = vmatpush.msra.mxu0 0.0
    %2257 = vmatpush.msra.mxu0 0.0
    %2258 = vmatpush.msra.mxu0 0.0
    %2259 = vmatpush.msra.mxu0 0.0
    %2260 = vmatpush.msra.mxu0 0.0
    %2261 = vmatpush.msra.mxu0 0.0
    %2262 = vmatpush.msra.mxu0 0.0
    %2263 = vmatpush.msra.mxu0 0.0
    %2264 = vmatpush.msra.mxu0 0.0
    %2265 = vmatpush.msra.mxu0 0.0
    %2266 = vmatpush.msra.mxu0 %v1995
    %2267 = vmatpush.msra.mxu0 %v1994
    %2268 = vmatpush.msra.mxu0 %v1993
    %2269 = vmatpush.msra.mxu0 %v1992
    %2270 = vmatmul.f32.gmra.mxu0 %v2252
    %v2271 = vpop.f32.mrf.mxu0
    %v2272 = vadd.f32 0.0, %v2271
    %2273 = vdwg.mxu0
    %v2275 = vrot.slane %v2272, 4
    %v2277 = vadd.f32 %v2053, %v2275
    %v2278 = vxor.u32 %v2277, 2147483648
    %v2279 = vmul.f32 %v2278, 1.442695
    %v2280 = vpow.pop %v2279
    %v2281 = vadd.f32 %v2280, 1.0
    %v2282 = vrcp.pop %v2281
    %v2283 = vmul.f32 %v2281, %v2282
    %v2284 = vsub.f32 1.0, %v2283
    %v2285 = vmul.f32 %v2282, %v2284
    %v2286 = vadd.f32 %v2282, %v2285
    %vm2287 = vweird.f32 %v2281
    %vm2288 = vweird.f32 %v2282
    %vm2289 = vmor %vm2287, %vm2288
    %v2290 = vsel %vm2289, %v2282, %v2286
    %v2291 = vand.u32 2147483647, %v2281
    %vm2292 = vcmp.eq.f32.partialorder %v2291, 8.507059e+37
    %v2293 = vand.u32 %v2281, 2147483648
    %v2294 = vor.u32 1.1754944e-38, %v2293
    %v2295 = vsel %vm2292, %v2294, %v2290
    %v2296 = vmul.f32 1.0, %v2295
    %v2297 = vtanh.pop %v2277
    %v2299 = vrot.slane %v2242, 4
    %v2301 = vmul.f32 %v2296, %v2299
    %2303 = vrot.lane.b32.xlu0 %v2297, 64
    %v2304 = vpop.permute.xlu0 %2303
    %v2306 = vmul.f32 %v2296, %v2304
    %2308 = vrot.lane.b32.xlu0 %v2306, 32
    %v2309 = vpop.permute.xlu0 %2308
    %v2311 = vadd.f32 %v2301, %v2309
    %v2312 = vtanh.pop %v2311
    %2314 = vrot.lane.b32.xlu0 %v2312, 64
    %v2315 = vpop.permute.xlu0 %2314
    %v2317 = vmul.f32 %v2296, %v2315
    %v2318 = vld [vmem:[%s15] sm:$0xff]
    %v2319 = vld [vmem:[%s15 + $0x8] sm:$0xff]
    %v2320 = vld [vmem:[%s15 + $0x10] sm:$0xff]
    %v2321 = vld [vmem:[%s15 + $0x18] sm:$0xff]
    %v2322 = vld [vmem:[%s15 + $0x20] sm:$0xff]
    %v2323 = vld [vmem:[%s15 + $0x28] sm:$0xff]
    %v2324 = vld [vmem:[%s15 + $0x30] sm:$0xff]
    %v2325 = vld [vmem:[%s15 + $0x38] sm:$0xff]
    %v2326 = vld [vmem:[%s15 + $0x40] sm:$0xff]
    %v2327 = vld [vmem:[%s15 + $0x48] sm:$0xff]
    %v2328 = vld [vmem:[%s15 + $0x50] sm:$0xff]
    %v2329 = vld [vmem:[%s15 + $0x58] sm:$0xff]
    %v2330 = vld [vmem:[%s15 + $0x60] sm:$0xff]
    %v2331 = vld [vmem:[%s15 + $0x68] sm:$0xff]
    %v2332 = vld [vmem:[%s15 + $0x70] sm:$0xff]
    %v2333 = vld [vmem:[%s15 + $0x78] sm:$0xff]
    %v2335 = vrot.slane %v2317, 4
    %2336 = vrot.lane.b32.xlu0 %v2335, 32
    %v2337 = vpop.permute.xlu0 %2336
    %v2338 = vsel %vm1705, %v2337, 0
    %2340 = vmatpush.msra.mxu0 0.0
    %2341 = vmatpush.msra.mxu0 0.0
    %2342 = vmatpush.msra.mxu0 0.0
    %2343 = vmatpush.msra.mxu0 0.0
    %2344 = vmatpush.msra.mxu0 0.0
    %2345 = vmatpush.msra.mxu0 0.0
    %2346 = vmatpush.msra.mxu0 0.0
    %2347 = vmatpush.msra.mxu0 0.0
    %2348 = vmatpush.msra.mxu0 0.0
    %2349 = vmatpush.msra.mxu0 0.0
    %2350 = vmatpush.msra.mxu0 0.0
    %2351 = vmatpush.msra.mxu0 0.0
    %2352 = vmatpush.msra.mxu0 %v2332
    %2353 = vmatpush.msra.mxu0 %v2330
    %2354 = vmatpush.msra.mxu0 %v2328
    %2355 = vmatpush.msra.mxu0 %v2326
    %2356 = vmatmul.f32.gmra.mxu0 %v2338
    %v2357 = vpop.f32.mrf.mxu0
    %v2358 = vadd.f32 0.0, %v2357
    %2359 = vdwg.mxu0
    %2360 = vmatpush.msra.mxu0 0.0
    %2361 = vmatpush.msra.mxu0 0.0
    %2362 = vmatpush.msra.mxu0 0.0
    %2363 = vmatpush.msra.mxu0 0.0
    %2364 = vmatpush.msra.mxu0 0.0
    %2365 = vmatpush.msra.mxu0 0.0
    %2366 = vmatpush.msra.mxu0 0.0
    %2367 = vmatpush.msra.mxu0 0.0
    %2368 = vmatpush.msra.mxu0 0.0
    %2369 = vmatpush.msra.mxu0 0.0
    %2370 = vmatpush.msra.mxu0 0.0
    %2371 = vmatpush.msra.mxu0 0.0
    %2372 = vmatpush.msra.mxu0 %v2333
    %2373 = vmatpush.msra.mxu0 %v2331
    %2374 = vmatpush.msra.mxu0 %v2329
    %2375 = vmatpush.msra.mxu0 %v2327
    %2376 = vmatmul.f32.gmra.mxu0 %v2338
    %v2377 = vpop.f32.mrf.mxu0
    %v2378 = vadd.f32 0.0, %v2377
    %2379 = vdwg.mxu0
    %v2381 = vrot.slane %v1971, 4
    %2382 = vrot.lane.b32.xlu0 %v2381, 32
    %v2383 = vpop.permute.xlu0 %2382
    %v2384 = vsel %vm1705, %v2383, 0
    %2386 = vmatpush.msra.mxu0 0.0
    %2387 = vmatpush.msra.mxu0 0.0
    %2388 = vmatpush.msra.mxu0 0.0
    %2389 = vmatpush.msra.mxu0 0.0
    %2390 = vmatpush.msra.mxu0 0.0
    %2391 = vmatpush.msra.mxu0 0.0
    %2392 = vmatpush.msra.mxu0 0.0
    %2393 = vmatpush.msra.mxu0 0.0
    %2394 = vmatpush.msra.mxu0 0.0
    %2395 = vmatpush.msra.mxu0 0.0
    %2396 = vmatpush.msra.mxu0 0.0
    %2397 = vmatpush.msra.mxu0 0.0
    %2398 = vmatpush.msra.mxu0 %v2324
    %2399 = vmatpush.msra.mxu0 %v2322
    %2400 = vmatpush.msra.mxu0 %v2320
    %2401 = vmatpush.msra.mxu0 %v2318
    %2402 = vmatmul.f32.gmra.mxu0 %v2384
    %v2403 = vpop.f32.mrf.mxu0
    %v2404 = vadd.f32 %v2358, %v2403
    %2405 = vdwg.mxu0
    %2406 = vmatpush.msra.mxu0 0.0
    %2407 = vmatpush.msra.mxu0 0.0
    %2408 = vmatpush.msra.mxu0 0.0
    %2409 = vmatpush.msra.mxu0 0.0
    %2410 = vmatpush.msra.mxu0 0.0
    %2411 = vmatpush.msra.mxu0 0.0
    %2412 = vmatpush.msra.mxu0 0.0
    %2413 = vmatpush.msra.mxu0 0.0
    %2414 = vmatpush.msra.mxu0 0.0
    %2415 = vmatpush.msra.mxu0 0.0
    %2416 = vmatpush.msra.mxu0 0.0
    %2417 = vmatpush.msra.mxu0 0.0
    %2418 = vmatpush.msra.mxu0 %v2325
    %2419 = vmatpush.msra.mxu0 %v2323
    %2420 = vmatpush.msra.mxu0 %v2321
    %2421 = vmatpush.msra.mxu0 %v2319
    %2422 = vmatmul.f32.gmra.mxu0 %v2384
    %v2423 = vpop.f32.mrf.mxu0
    %v2424 = vadd.f32 %v2378, %v2423
    %2425 = vdwg.mxu0
    %v2426 = vld [vmem:[%s16] sm:$0x3]
    %v2428 = vperm.slane %v2426, 0
    %v2429 = vperm.slane %v2426, 1
    %v2432 = vadd.f32 %v2404, %v2428
    %v2433 = vadd.f32 %v2424, %v2429
    %v2436 = vrot.slane %v2433, 4
    %v2437 = vsel %vm497, %v2432, %v2436
    %vm2439 = vcmask 228356
    %vm2440 = vmor %vm2439, %vm497
    %2441 = vst.msk [vmem:[#allocation2] sm:$0xff] %vm2440, %v2437
    // Predicated region
    $region70: #{gat_lstm_forward.1} parent=1 // pred_check
      _
    $region71: #{gat_lstm_forward.1} parent=1 // pred_check_branch
      %2443 = sbr.rel (0) target = $region73
    $region72: #{gat_lstm_forward.1} parent=1 // pred_region
      %2445 = vsyncadd [#allocation3], 0
      %s2447 = sshll.u32 [#allocation2], 4
      %s2448 = int_to_ptr.vmem [resolvable:$true] %s2447
      %s2449 = sshll.u32 %s17, 4
      %s2450 = int_to_ptr.hbm [resolvable:$true] %s2449
      %2452 = dma.vmem_to_hbm [thread:$0]  %s2448, 128, %s2450, [#allocation3]
    $region73: #{gat_lstm_forward.1} parent=1 // pred_fallthru
      _
    // Predicated region
    $region74: #{gat_lstm_forward.1} parent=1 // pred_check
      _
    $region75: #{gat_lstm_forward.1} parent=1 // pred_check_branch
      %2454 = sbr.rel (0) target = $region77
    $region76: #{gat_lstm_forward.1} parent=1 // pred_region
      %2456 = dma.done [#allocation3], 128
    $region77: #{gat_lstm_forward.1} parent=1 // pred_fallthru
      _
    %2457 = vsyncpa [#allocation3], 1

</llo_original>
